<compile_context>
chip_gen: v7x
topology: tpu7x:2x2x1
jax: 0.10.0
libtpu: 0.0.40
codegen_flags: <defaults>
</compile_context>

<pallas_src>
import functools

import jax
import jax.numpy as jnp
from jax import lax
from jax.experimental import pallas as pl
from jax.experimental.pallas import tpu as pltpu

# ---------------- small synthetic Gemma config ----------------
VOCAB = 256          # vocab_size
NUM_LAYERS = 2       # num_layers
EMBED = 128          # embedding_dim
NUM_HEADS = 4        # attn_config.num_heads
HEAD_DIM = 32        # attn_config.head_dim
NUM_KV = 1           # attn_config.num_query_groups (MQA, like Gemma)
INTERMEDIATE = 256   # ff_config.intermediate_size (gated)
MAX_SEQ = 16         # kv_cache_max / max_seq_len
ROTARY_PCT = 1.0     # attn_config.rotary_percentage
EPS = 1e-6           # RMSNorm epsilon
ROPE_BASE = 10000.0

MASK_VALUE = -1e30   # additive causal mask value (finite, avoids inf-inf NaNs)


# ---------------- in-kernel helpers (traced inside the Pallas body) ----------------
def _rmsnorm(x, w, eps):
    # Gemma zero-centered gamma: y = normed * (1 + w); all f32.
    var = jnp.mean(x * x, axis=-1, keepdims=True)
    return x * lax.rsqrt(var + eps) * (1.0 + w)


def _gelu_tanh(x):
    c = 0.7978845608028654  # sqrt(2/pi)
    return 0.5 * x * (1.0 + jnp.tanh(c * (x + 0.044715 * x * x * x)))


# ---------------- single fused whole-model kernel ----------------
def _gemma_kernel(x_ref, attn_norm_ref, wqkv_ref, wo_ref, ff_norm_ref,
                  w13_ref, w2_ref, cosq_ref, sinq_ref, cosk_ref, sink_ref,
                  final_norm_ref, lm_ref, o_ref, carry_ref,
                  *, eps, num_heads, head_dim, num_layers, intermediate):
    l = pl.program_id(1)

    # Residual-stream carry lives in VMEM scratch; load embeddings at layer 0.
    @pl.when(l == 0)
    def _():
        carry_ref[...] = x_ref[...]

    x = carry_ref[...]                                   # (T, E) f32
    t = x.shape[0]
    hd = num_heads * head_dim                            # query width
    kvd = head_dim                                       # MQA: one KV head

    # ----- attention sub-block -----
    h = _rmsnorm(x, attn_norm_ref[...], eps)
    hb = h.astype(jnp.bfloat16)
    # One wide lane-dense projection: [q | rot_half(q) | k | rot_half(k) | v | pad]
    qkv = jnp.dot(hb, wqkv_ref[...], preferred_element_type=jnp.float32)   # (T, 384)

    # RoPE (rotation folded into weight columns) -> purely elementwise.
    q = qkv[:, :hd] * cosq_ref[...] + qkv[:, hd:2 * hd] * sinq_ref[...]
    k = (qkv[:, 2 * hd:2 * hd + kvd] * cosk_ref[...]
         + qkv[:, 2 * hd + kvd:2 * hd + 2 * kvd] * sink_ref[...])
    v = qkv[:, 2 * hd + 2 * kvd:2 * hd + 3 * kvd]
    kb = k.astype(jnp.bfloat16)
    vb = v.astype(jnp.bfloat16)

    # Additive causal mask built once per grid step (prefill: positions 0..T-1).
    row = lax.broadcasted_iota(jnp.int32, (t, t), 0)
    col = lax.broadcasted_iota(jnp.int32, (t, t), 1)
    mask_add = jnp.where(col <= row, 0.0, MASK_VALUE).astype(jnp.float32)

    # Per-head softmax attention (static unroll, H=4); out-proj done once after.
    ohs = []
    for hh in range(num_heads):
        qh = q[:, hh * head_dim:(hh + 1) * head_dim].astype(jnp.bfloat16)
        s = lax.dot_general(qh, kb, (((1,), (1,)), ((), ())),
                            preferred_element_type=jnp.float32) + mask_add
        m = jnp.max(s, axis=-1, keepdims=True)
        p = jnp.exp(s - m)
        p = p * pl.reciprocal(jnp.sum(p, axis=-1, keepdims=True), approx=True)
        ohs.append(jnp.dot(p.astype(jnp.bfloat16), vb,
                           preferred_element_type=jnp.float32))
    oc = jnp.concatenate(ohs, axis=-1).astype(jnp.bfloat16)     # (T, H*D)
    x = x + jnp.dot(oc, wo_ref[...], preferred_element_type=jnp.float32)

    # ----- feed-forward sub-block (gated GELU), single merged W1|W3 dot -----
    h2 = _rmsnorm(x, ff_norm_ref[...], eps)
    ab = jnp.dot(h2.astype(jnp.bfloat16), w13_ref[...],
                 preferred_element_type=jnp.float32)            # (T, 2*I)
    a = ab[:, :intermediate]
    b = ab[:, intermediate:]
    gact = (_gelu_tanh(a) * b).astype(jnp.bfloat16)
    x = x + jnp.dot(gact, w2_ref[...], preferred_element_type=jnp.float32)

    carry_ref[...] = x

    # ----- final RMSNorm + tied lm_head, fused into the last layer step -----
    @pl.when(l == num_layers - 1)
    def _():
        hf = _rmsnorm(x, final_norm_ref[...], eps)
        o_ref[...] = jnp.dot(hf.astype(jnp.bfloat16), lm_ref[...],
                             preferred_element_type=jnp.float32).astype(o_ref.dtype)


def gemma_fused_forward(x2d, prepped, cos_q, sin_q, cos_k, sin_k):
    M, E = x2d.shape
    T = cos_q.shape[0]
    B = M // T
    L = prepped["wqkv_t"].shape[0]
    NQKV = prepped["wqkv_t"].shape[2]
    HD = prepped["wo_t"].shape[1]
    I2 = prepped["w13_t"].shape[2]
    I = prepped["w2_t"].shape[1]
    V = prepped["lm_head_t"].shape[1]

    def wspec(shape):
        # Stacked per-layer weight: leading L dim squeezed, selected by grid l.
        nd = len(shape)
        return pl.BlockSpec((None,) + shape, lambda b, l, _n=nd: (l,) + (0,) * _n)

    def cspec(shape):
        # Constant across the whole grid: DMA'd once, stays resident in VMEM.
        nd = len(shape)
        return pl.BlockSpec(shape, lambda b, l, _n=nd: (0,) * _n)

    kernel = functools.partial(
        _gemma_kernel, eps=EPS, num_heads=NUM_HEADS, head_dim=HEAD_DIM,
        num_layers=L, intermediate=I)

    return pl.pallas_call(
        kernel,
        out_shape=jax.ShapeDtypeStruct((M, V), jnp.float32),
        grid_spec=pltpu.PrefetchScalarGridSpec(
            num_scalar_prefetch=0,
            grid=(B, L),                                   # batch outer, layers inner
            in_specs=[
                pl.BlockSpec((T, E), lambda b, l: (b, 0)),  # x (per-batch block)
                wspec((1, E)),                              # pre-attn norm gamma
                wspec((E, NQKV)),                           # [Wq|WqR|Wk|WkR|Wv|pad]^T
                wspec((HD, E)),                             # Wo^T
                wspec((1, E)),                              # pre-ff norm gamma
                wspec((E, I2)),                             # [W1|W3]^T
                wspec((I, E)),                              # W2^T
                cspec((T, HD)), cspec((T, HD)),             # cos_q, sin_q (head-tiled)
                cspec((T, NUM_KV * HEAD_DIM)),              # cos_k
                cspec((T, NUM_KV * HEAD_DIM)),              # sin_k
                cspec((1, E)),                              # final norm gamma
                cspec((E, V)),                              # tied lm_head^T
            ],
            out_specs=pl.BlockSpec((T, V), lambda b, l: (b, 0)),
            scratch_shapes=[pltpu.VMEM((T, E), jnp.float32)],   # residual carry
        ),
        compiler_params=pltpu.CompilerParams(
            dimension_semantics=("parallel", "arbitrary")),
    )(x2d, prepped["attn_norm"], prepped["wqkv_t"], prepped["wo_t"],
      prepped["ff_norm"], prepped["w13_t"], prepped["w2_t"],
      cos_q, sin_q, cos_k, sin_k,
      prepped["final_norm"], prepped["lm_head_t"])


# ---------------- plain-JAX glue & parameter prep ----------------
def build_rope_cache(size, dim, base=ROPE_BASE):
    theta = 1.0 / (base ** (jnp.arange(0, dim, 2, dtype=jnp.float32) / dim))
    seq = jnp.arange(size, dtype=jnp.float32)
    idx_theta = jnp.outer(seq, theta)            # (size, dim // 2)
    return jnp.cos(idx_theta), jnp.sin(idx_theta)


def _rotate_half_cols(w_t, n_heads, head_dim):
    """Given W^T (E, n_heads*head_dim), return W^T with rotate_half folded in,
    i.e. (h @ out) == rotate_half_per_head(h @ W^T)."""
    e = w_t.shape[0]
    w3 = w_t.reshape(e, n_heads, head_dim)
    w1, w2 = w3[..., : head_dim // 2], w3[..., head_dim // 2:]
    return jnp.concatenate([-w2, w1], axis=-1).reshape(e, n_heads * head_dim)


def init_params(key):
    """Parameters in the PyTorch (out_features, in_features) convention."""
    std = 0.02
    keys = jax.random.split(key, 2 + NUM_LAYERS)
    emb = jax.random.normal(keys[0], (VOCAB, EMBED), jnp.float32) * std
    emb = emb.at[0].set(0.0)                     # nn.Embedding padding_idx=0
    params = {
        "tok_embedding": emb,                    # also the (tied) lm_head weight
        "final_norm_w": jax.random.normal(keys[1], (EMBED,), jnp.float32) * 0.1,
        "layers": [],
    }
    qkv_out = (NUM_HEADS + 2 * NUM_KV) * HEAD_DIM
    for l in range(NUM_LAYERS):
        lk = jax.random.split(keys[2 + l], 7)
        params["layers"].append(dict(
            pre_attn_norm_w=jax.random.normal(lk[0], (EMBED,), jnp.float32) * 0.1,
            qkv_w=jax.random.normal(lk[1], (qkv_out, EMBED), jnp.float32) * std,
            out_w=jax.random.normal(lk[2], (EMBED, NUM_HEADS * HEAD_DIM), jnp.float32) * std,
            pre_ff_norm_w=jax.random.normal(lk[3], (EMBED,), jnp.float32) * 0.1,
            ff_w1=jax.random.normal(lk[4], (INTERMEDIATE, EMBED), jnp.float32) * std,
            ff_w3=jax.random.normal(lk[5], (INTERMEDIATE, EMBED), jnp.float32) * std,
            ff_w2=jax.random.normal(lk[6], (EMBED, INTERMEDIATE), jnp.float32) * std,
        ))
    return params


def prepare_params(params):
    """One-time layout prep: transpose / merge / stack weights along L,
    fold RoPE rotation + 1/sqrt(head_dim) into the Q weights, fold sqrt(E)
    into the embedding gather table, cast MXU weights to bf16."""
    HD, KVD = NUM_HEADS * HEAD_DIM, NUM_KV * HEAD_DIM
    bf16 = jnp.bfloat16
    scale = 1.0 / (HEAD_DIM ** 0.5)

    attn_norms, ff_norms, wqkvs, wos, w13s, w2s = [], [], [], [], [], []
    for layer in params["layers"]:
        qkv = layer["qkv_w"]                                 # (qkv_out, E)
        wq_t = qkv[:HD, :].T * scale                         # fold softmax scale
        wk_t = qkv[HD:HD + KVD, :].T
        wv_t = qkv[HD + KVD:, :].T
        wqr_t = _rotate_half_cols(wq_t, NUM_HEADS, HEAD_DIM)
        wkr_t = _rotate_half_cols(wk_t, NUM_KV, HEAD_DIM)
        packed = jnp.concatenate([wq_t, wqr_t, wk_t, wkr_t, wv_t], axis=1)
        pad = (-packed.shape[1]) % 128                       # lane-dense N (-> 384)
        if pad:
            packed = jnp.pad(packed, ((0, 0), (0, pad)))
        wqkvs.append(packed.astype(bf16))
        wos.append(layer["out_w"].T.astype(bf16))            # (H*D, E)
        w13s.append(jnp.concatenate([layer["ff_w1"].T, layer["ff_w3"].T],
                                    axis=1).astype(bf16))    # (E, 2*I)
        w2s.append(layer["ff_w2"].T.astype(bf16))            # (I, E)
        attn_norms.append(layer["pre_attn_norm_w"].reshape(1, EMBED))
        ff_norms.append(layer["pre_ff_norm_w"].reshape(1, EMBED))

    return {
        "tok_embedding_scaled": params["tok_embedding"] * (EMBED ** 0.5),  # gather table
        "lm_head_t": params["tok_embedding"].T.astype(bf16),               # (E, V) tied, unscaled
        "final_norm": params["final_norm_w"].reshape(1, EMBED),
        "attn_norm": jnp.stack(attn_norms),     # (L, 1, E)
        "ff_norm": jnp.stack(ff_norms),         # (L, 1, E)
        "wqkv_t": jnp.stack(wqkvs),             # (L, E, 384)
        "wo_t": jnp.stack(wos),                 # (L, H*D, E)
        "w13_t": jnp.stack(w13s),               # (L, E, 2*I)
        "w2_t": jnp.stack(w2s),                 # (L, I, E)
    }


def gemma_forward(prepped, idx, input_pos, rope_cos, rope_sin):
    B, T = idx.shape
    # TODO(synk): KV-cache update/read collapsed to prefill-only causal attention
    # (equivalent to the reference for input_pos == arange(T) on an empty cache).
    cos = rope_cos[input_pos]                    # (T, HEAD_DIM // 2)
    sin = rope_sin[input_pos]
    cos2 = jnp.concatenate([cos, cos], axis=-1)  # (T, HEAD_DIM)
    sin2 = jnp.concatenate([sin, sin], axis=-1)
    cos_q = jnp.tile(cos2, (1, NUM_HEADS))       # (T, H*D), head-major tiling
    sin_q = jnp.tile(sin2, (1, NUM_HEADS))
    cos_k = jnp.tile(cos2, (1, NUM_KV))          # (T, KV*D)
    sin_k = jnp.tile(sin2, (1, NUM_KV))

    x = jnp.take(prepped["tok_embedding_scaled"], idx, axis=0)   # gather (sqrt(E) pre-folded)
    x2 = x.reshape(B * T, EMBED)

    logits = gemma_fused_forward(x2, prepped, cos_q, sin_q, cos_k, sin_k)
    return logits.reshape(B, T, VOCAB)


if __name__ == "__main__":
    key = jax.random.PRNGKey(0)
    pkey, ikey = jax.random.split(key)
    params = init_params(pkey)
    prepped = prepare_params(params)             # one-time weight layout prep

    B, T = 2, 8
    idx = jax.random.randint(ikey, (B, T), 1, VOCAB, dtype=jnp.int32)
    input_pos = jnp.arange(T, dtype=jnp.int32)
    rope_cos, rope_sin = build_rope_cache(MAX_SEQ, int(ROTARY_PCT * HEAD_DIM))

    fwd = jax.jit(gemma_forward)
    logits = fwd(prepped, idx, input_pos, rope_cos, rope_sin)
    jax.block_until_ready(logits)

    assert logits.shape == (B, T, VOCAB), logits.shape
    assert bool(jnp.all(jnp.isfinite(logits)))
    print("KERNEL_OK")
</pallas_src>

<mosaic_0001>
module attributes {stable_mosaic.version = 11 : i64} {
  func.func @_gemma_kernel(%arg0: i32, %arg1: i32, %arg2: memref<8x128xf32, #tpu.memory_space<vmem>>, %arg3: memref<1x1x128xf32, #tpu.memory_space<vmem>>, %arg4: memref<1x128x384xbf16, #tpu.memory_space<vmem>>, %arg5: memref<1x128x128xbf16, #tpu.memory_space<vmem>>, %arg6: memref<1x1x128xf32, #tpu.memory_space<vmem>>, %arg7: memref<1x128x512xbf16, #tpu.memory_space<vmem>>, %arg8: memref<1x256x128xbf16, #tpu.memory_space<vmem>>, %arg9: memref<8x128xf32, #tpu.memory_space<vmem>>, %arg10: memref<8x128xf32, #tpu.memory_space<vmem>>, %arg11: memref<8x32xf32, #tpu.memory_space<vmem>>, %arg12: memref<8x32xf32, #tpu.memory_space<vmem>>, %arg13: memref<1x128xf32, #tpu.memory_space<vmem>>, %arg14: memref<128x256xbf16, #tpu.memory_space<vmem>>, %arg15: memref<8x256xf32, #tpu.memory_space<vmem>>, %arg16: memref<8x128xf32, #tpu.memory_space<vmem>>) attributes {dimension_semantics = [#tpu.dimension_semantics<parallel>, #tpu.dimension_semantics<arbitrary>], iteration_bounds = array<i64: 2, 2>, scalar_prefetch = 0 : i64, scratch_operands = 1 : i64, tpu.core_type = #tpu.core_type<tc>, window_params = [{transform_indices = @transform_0, window_bounds = array<i64: 8, 128>}, {transform_indices = @transform_1, window_bounds = array<i64: 1, 1, 128>}, {transform_indices = @transform_2, window_bounds = array<i64: 1, 128, 384>}, {transform_indices = @transform_3, window_bounds = array<i64: 1, 128, 128>}, {transform_indices = @transform_4, window_bounds = array<i64: 1, 1, 128>}, {transform_indices = @transform_5, window_bounds = array<i64: 1, 128, 512>}, {transform_indices = @transform_6, window_bounds = array<i64: 1, 256, 128>}, {pipeline_mode = #tpu.pipeline_mode<synchronous>, transform_indices = @transform_7, window_bounds = array<i64: 8, 128>}, {pipeline_mode = #tpu.pipeline_mode<synchronous>, transform_indices = @transform_8, window_bounds = array<i64: 8, 128>}, {pipeline_mode = #tpu.pipeline_mode<synchronous>, transform_indices = @transform_9, window_bounds = array<i64: 8, 32>}, {pipeline_mode = #tpu.pipeline_mode<synchronous>, transform_indices = @transform_10, window_bounds = array<i64: 8, 32>}, {pipeline_mode = #tpu.pipeline_mode<synchronous>, transform_indices = @transform_11, window_bounds = array<i64: 1, 128>}, {pipeline_mode = #tpu.pipeline_mode<synchronous>, transform_indices = @transform_12, window_bounds = array<i64: 128, 256>}, {transform_indices = @transform_13, window_bounds = array<i64: 8, 256>}]} {
    %c0_i32 = arith.constant 0 : i32
    %0 = arith.cmpi eq, %arg1, %c0_i32 : i32
    %1 = arith.extui %0 : i1 to i32
    %c0_i32_0 = arith.constant 0 : i32
    %2 = arith.cmpi ne, %1, %c0_i32_0 : i32
    scf.if %2 {
      %c0_64 = arith.constant 0 : index
      %c0_65 = arith.constant 0 : index
      %162 = vector.load %arg2[%c0_64, %c0_65] : memref<8x128xf32, #tpu.memory_space<vmem>>, vector<8x128xf32>
      %c0_66 = arith.constant 0 : index
      %c0_67 = arith.constant 0 : index
      %163 = vector.load %arg16[%c0_66, %c0_67] : memref<8x128xf32, #tpu.memory_space<vmem>>, vector<8x128xf32>
      tpu.vector_store %arg16[%c0_66, %c0_67], %162 {strides = array<i32>} : memref<8x128xf32, #tpu.memory_space<vmem>>, vector<8x128xf32>,
    } else {
    }
    %c0 = arith.constant 0 : index
    %c0_1 = arith.constant 0 : index
    %3 = vector.load %arg16[%c0, %c0_1] : memref<8x128xf32, #tpu.memory_space<vmem>>, vector<8x128xf32>
    %c0_2 = arith.constant 0 : index
    %c0_3 = arith.constant 0 : index
    %c0_4 = arith.constant 0 : index
    %4 = vector.load %arg3[%c0_2, %c0_3, %c0_4] : memref<1x1x128xf32, #tpu.memory_space<vmem>>, vector<1x1x128xf32>
    %5 = vector.shape_cast %4 : vector<1x1x128xf32> to vector<1x128xf32>
    %6 = arith.mulf %3, %3 : vector<8x128xf32>
    %cst = arith.constant dense<0.000000e+00> : vector<8xf32>
    %7 = vector.multi_reduction <add>, %6, %cst [1] : vector<8x128xf32> to vector<8xf32>
    %8 = vector.shape_cast %7 : vector<8xf32> to vector<8x1xf32>
    %cst_5 = arith.constant 1.280000e+02 : f32
    %9 = vector.broadcast %cst_5 : f32 to vector<8x1xf32>
    %10 = arith.divf %8, %9 : vector<8x1xf32>
    %cst_6 = arith.constant 9.99999997E-7 : f32
    %11 = vector.broadcast %cst_6 : f32 to vector<8x1xf32>
    %12 = arith.addf %10, %11 : vector<8x1xf32>
    %13 = math.rsqrt %12 : vector<8x1xf32>
    %14 = vector.broadcast %13 : vector<8x1xf32> to vector<8x128xf32>
    %15 = arith.mulf %3, %14 : vector<8x128xf32>
    %cst_7 = arith.constant 1.000000e+00 : f32
    %16 = vector.broadcast %cst_7 : f32 to vector<1x128xf32>
    %17 = arith.addf %16, %5 : vector<1x128xf32>
    %18 = vector.broadcast %17 : vector<1x128xf32> to vector<8x128xf32>
    %19 = arith.mulf %15, %18 : vector<8x128xf32>
    %20 = arith.truncf %19 : vector<8x128xf32> to vector<8x128xbf16>
    %c0_8 = arith.constant 0 : index
    %c0_9 = arith.constant 0 : index
    %c0_10 = arith.constant 0 : index
    %21 = vector.load %arg4[%c0_8, %c0_9, %c0_10] : memref<1x128x384xbf16, #tpu.memory_space<vmem>>, vector<1x128x384xbf16>
    %22 = vector.shape_cast %21 : vector<1x128x384xbf16> to vector<128x384xbf16>
    %cst_11 = arith.constant dense<0.000000e+00> : vector<8x384xf32>
    %23 = tpu.matmul %20, %22, %cst_11 {dimension_numbers = #tpu.dot_dimension_numbers<[1], [0], [0], [1], [0, 0, 1, 1], [], []>} : vector<8x128xbf16>, vector<128x384xbf16>, vector<8x384xf32> -> vector<8x384xf32>
    %24 = vector.extract_strided_slice %23 {offsets = [0, 0], sizes = [8, 128], strides = [1, 1]} : vector<8x384xf32> to vector<8x128xf32>
    %c0_12 = arith.constant 0 : index
    %c0_13 = arith.constant 0 : index
    %25 = vector.load %arg9[%c0_12, %c0_13] : memref<8x128xf32, #tpu.memory_space<vmem>>, vector<8x128xf32>
    %26 = arith.mulf %24, %25 : vector<8x128xf32>
    %27 = vector.extract_strided_slice %23 {offsets = [0, 128], sizes = [8, 128], strides = [1, 1]} : vector<8x384xf32> to vector<8x128xf32>
    %c0_14 = arith.constant 0 : index
    %c0_15 = arith.constant 0 : index
    %28 = vector.load %arg10[%c0_14, %c0_15] : memref<8x128xf32, #tpu.memory_space<vmem>>, vector<8x128xf32>
    %29 = arith.mulf %27, %28 : vector<8x128xf32>
    %30 = arith.addf %26, %29 : vector<8x128xf32>
    %31 = vector.extract_strided_slice %23 {offsets = [0, 256], sizes = [8, 32], strides = [1, 1]} : vector<8x384xf32> to vector<8x32xf32>
    %c0_16 = arith.constant 0 : index
    %c0_17 = arith.constant 0 : index
    %32 = vector.load %arg11[%c0_16, %c0_17] : memref<8x32xf32, #tpu.memory_space<vmem>>, vector<8x32xf32>
    %33 = arith.mulf %31, %32 : vector<8x32xf32>
    %34 = vector.extract_strided_slice %23 {offsets = [0, 288], sizes = [8, 32], strides = [1, 1]} : vector<8x384xf32> to vector<8x32xf32>
    %c0_18 = arith.constant 0 : index
    %c0_19 = arith.constant 0 : index
    %35 = vector.load %arg12[%c0_18, %c0_19] : memref<8x32xf32, #tpu.memory_space<vmem>>, vector<8x32xf32>
    %36 = arith.mulf %34, %35 : vector<8x32xf32>
    %37 = arith.addf %33, %36 : vector<8x32xf32>
    %38 = vector.extract_strided_slice %23 {offsets = [0, 320], sizes = [8, 32], strides = [1, 1]} : vector<8x384xf32> to vector<8x32xf32>
    %39 = arith.truncf %37 : vector<8x32xf32> to vector<8x32xbf16>
    %40 = arith.truncf %38 : vector<8x32xf32> to vector<8x32xbf16>
    %41 = tpu.iota {dimensions = array<i32: 0>} : vector<8x8xi32>
    %42 = tpu.iota {dimensions = array<i32: 1>} : vector<8x8xi32>
    %43 = arith.cmpi sle, %42, %41 : vector<8x8xi32>
    %cst_20 = arith.constant 0.000000e+00 : f32
    %cst_21 = arith.constant -1.000000e+30 : f32
    %44 = vector.broadcast %cst_20 : f32 to vector<8x8xf32>
    %45 = vector.broadcast %cst_21 : f32 to vector<8x8xf32>
    %46 = arith.select %43, %44, %45 : vector<8x8xi1>, vector<8x8xf32>
    %47 = vector.extract_strided_slice %30 {offsets = [0, 0], sizes = [8, 32], strides = [1, 1]} : vector<8x128xf32> to vector<8x32xf32>
    %48 = arith.truncf %47 : vector<8x32xf32> to vector<8x32xbf16>
    %cst_22 = arith.constant dense<0.000000e+00> : vector<8x8xf32>
    %49 = tpu.matmul %48, %39, %cst_22 {dimension_numbers = #tpu.dot_dimension_numbers<[1], [1], [0], [0], [0, 0, 1, 0], [], []>} : vector<8x32xbf16>, vector<8x32xbf16>, vector<8x8xf32> -> vector<8x8xf32>
    %50 = arith.addf %49, %46 : vector<8x8xf32>
    %cst_23 = arith.constant dense<0xFF800000> : vector<8xf32>
    %51 = vector.multi_reduction <maximumf>, %50, %cst_23 [1] : vector<8x8xf32> to vector<8xf32>
    %52 = vector.shape_cast %51 : vector<8xf32> to vector<8x1xf32>
    %53 = vector.broadcast %52 : vector<8x1xf32> to vector<8x8xf32>
    %54 = arith.subf %50, %53 : vector<8x8xf32>
    %55 = math.exp %54 : vector<8x8xf32>
    %cst_24 = arith.constant dense<0.000000e+00> : vector<8xf32>
    %56 = vector.multi_reduction <add>, %55, %cst_24 [1] : vector<8x8xf32> to vector<8xf32>
    %57 = vector.shape_cast %56 : vector<8xf32> to vector<8x1xf32>
    %58 = tpu.reciprocal %57 {approx = true} : vector<8x1xf32> -> vector<8x1xf32>
    %59 = vector.broadcast %58 : vector<8x1xf32> to vector<8x8xf32>
    %60 = arith.mulf %55, %59 : vector<8x8xf32>
    %61 = arith.truncf %60 : vector<8x8xf32> to vector<8x8xbf16>
    %cst_25 = arith.constant dense<0.000000e+00> : vector<8x32xf32>
    %62 = tpu.matmul %61, %40, %cst_25 {dimension_numbers = #tpu.dot_dimension_numbers<[1], [0], [0], [1], [0, 0, 1, 1], [], []>} : vector<8x8xbf16>, vector<8x32xbf16>, vector<8x32xf32> -> vector<8x32xf32>
    %63 = vector.extract_strided_slice %30 {offsets = [0, 32], sizes = [8, 32], strides = [1, 1]} : vector<8x128xf32> to vector<8x32xf32>
    %64 = arith.truncf %63 : vector<8x32xf32> to vector<8x32xbf16>
    %cst_26 = arith.constant dense<0.000000e+00> : vector<8x8xf32>
    %65 = tpu.matmul %64, %39, %cst_26 {dimension_numbers = #tpu.dot_dimension_numbers<[1], [1], [0], [0], [0, 0, 1, 0], [], []>} : vector<8x32xbf16>, vector<8x32xbf16>, vector<8x8xf32> -> vector<8x8xf32>
    %66 = arith.addf %65, %46 : vector<8x8xf32>
    %cst_27 = arith.constant dense<0xFF800000> : vector<8xf32>
    %67 = vector.multi_reduction <maximumf>, %66, %cst_27 [1] : vector<8x8xf32> to vector<8xf32>
    %68 = vector.shape_cast %67 : vector<8xf32> to vector<8x1xf32>
    %69 = vector.broadcast %68 : vector<8x1xf32> to vector<8x8xf32>
    %70 = arith.subf %66, %69 : vector<8x8xf32>
    %71 = math.exp %70 : vector<8x8xf32>
    %cst_28 = arith.constant dense<0.000000e+00> : vector<8xf32>
    %72 = vector.multi_reduction <add>, %71, %cst_28 [1] : vector<8x8xf32> to vector<8xf32>
    %73 = vector.shape_cast %72 : vector<8xf32> to vector<8x1xf32>
    %74 = tpu.reciprocal %73 {approx = true} : vector<8x1xf32> -> vector<8x1xf32>
    %75 = vector.broadcast %74 : vector<8x1xf32> to vector<8x8xf32>
    %76 = arith.mulf %71, %75 : vector<8x8xf32>
    %77 = arith.truncf %76 : vector<8x8xf32> to vector<8x8xbf16>
    %cst_29 = arith.constant dense<0.000000e+00> : vector<8x32xf32>
    %78 = tpu.matmul %77, %40, %cst_29 {dimension_numbers = #tpu.dot_dimension_numbers<[1], [0], [0], [1], [0, 0, 1, 1], [], []>} : vector<8x8xbf16>, vector<8x32xbf16>, vector<8x32xf32> -> vector<8x32xf32>
    %79 = vector.extract_strided_slice %30 {offsets = [0, 64], sizes = [8, 32], strides = [1, 1]} : vector<8x128xf32> to vector<8x32xf32>
    %80 = arith.truncf %79 : vector<8x32xf32> to vector<8x32xbf16>
    %cst_30 = arith.constant dense<0.000000e+00> : vector<8x8xf32>
    %81 = tpu.matmul %80, %39, %cst_30 {dimension_numbers = #tpu.dot_dimension_numbers<[1], [1], [0], [0], [0, 0, 1, 0], [], []>} : vector<8x32xbf16>, vector<8x32xbf16>, vector<8x8xf32> -> vector<8x8xf32>
    %82 = arith.addf %81, %46 : vector<8x8xf32>
    %cst_31 = arith.constant dense<0xFF800000> : vector<8xf32>
    %83 = vector.multi_reduction <maximumf>, %82, %cst_31 [1] : vector<8x8xf32> to vector<8xf32>
    %84 = vector.shape_cast %83 : vector<8xf32> to vector<8x1xf32>
    %85 = vector.broadcast %84 : vector<8x1xf32> to vector<8x8xf32>
    %86 = arith.subf %82, %85 : vector<8x8xf32>
    %87 = math.exp %86 : vector<8x8xf32>
    %cst_32 = arith.constant dense<0.000000e+00> : vector<8xf32>
    %88 = vector.multi_reduction <add>, %87, %cst_32 [1] : vector<8x8xf32> to vector<8xf32>
    %89 = vector.shape_cast %88 : vector<8xf32> to vector<8x1xf32>
    %90 = tpu.reciprocal %89 {approx = true} : vector<8x1xf32> -> vector<8x1xf32>
    %91 = vector.broadcast %90 : vector<8x1xf32> to vector<8x8xf32>
    %92 = arith.mulf %87, %91 : vector<8x8xf32>
    %93 = arith.truncf %92 : vector<8x8xf32> to vector<8x8xbf16>
    %cst_33 = arith.constant dense<0.000000e+00> : vector<8x32xf32>
    %94 = tpu.matmul %93, %40, %cst_33 {dimension_numbers = #tpu.dot_dimension_numbers<[1], [0], [0], [1], [0, 0, 1, 1], [], []>} : vector<8x8xbf16>, vector<8x32xbf16>, vector<8x32xf32> -> vector<8x32xf32>
    %95 = vector.extract_strided_slice %30 {offsets = [0, 96], sizes = [8, 32], strides = [1, 1]} : vector<8x128xf32> to vector<8x32xf32>
    %96 = arith.truncf %95 : vector<8x32xf32> to vector<8x32xbf16>
    %cst_34 = arith.constant dense<0.000000e+00> : vector<8x8xf32>
    %97 = tpu.matmul %96, %39, %cst_34 {dimension_numbers = #tpu.dot_dimension_numbers<[1], [1], [0], [0], [0, 0, 1, 0], [], []>} : vector<8x32xbf16>, vector<8x32xbf16>, vector<8x8xf32> -> vector<8x8xf32>
    %98 = arith.addf %97, %46 : vector<8x8xf32>
    %cst_35 = arith.constant dense<0xFF800000> : vector<8xf32>
    %99 = vector.multi_reduction <maximumf>, %98, %cst_35 [1] : vector<8x8xf32> to vector<8xf32>
    %100 = vector.shape_cast %99 : vector<8xf32> to vector<8x1xf32>
    %101 = vector.broadcast %100 : vector<8x1xf32> to vector<8x8xf32>
    %102 = arith.subf %98, %101 : vector<8x8xf32>
    %103 = math.exp %102 : vector<8x8xf32>
    %cst_36 = arith.constant dense<0.000000e+00> : vector<8xf32>
    %104 = vector.multi_reduction <add>, %103, %cst_36 [1] : vector<8x8xf32> to vector<8xf32>
    %105 = vector.shape_cast %104 : vector<8xf32> to vector<8x1xf32>
    %106 = tpu.reciprocal %105 {approx = true} : vector<8x1xf32> -> vector<8x1xf32>
    %107 = vector.broadcast %106 : vector<8x1xf32> to vector<8x8xf32>
    %108 = arith.mulf %103, %107 : vector<8x8xf32>
    %109 = arith.truncf %108 : vector<8x8xf32> to vector<8x8xbf16>
    %cst_37 = arith.constant dense<0.000000e+00> : vector<8x32xf32>
    %110 = tpu.matmul %109, %40, %cst_37 {dimension_numbers = #tpu.dot_dimension_numbers<[1], [0], [0], [1], [0, 0, 1, 1], [], []>} : vector<8x8xbf16>, vector<8x32xbf16>, vector<8x32xf32> -> vector<8x32xf32>
    %111 = tpu.concatenate %62, %78, %94, %110 in 1 : vector<8x32xf32>, vector<8x32xf32>, vector<8x32xf32>, vector<8x32xf32> -> vector<8x128xf32>
    %112 = arith.truncf %111 : vector<8x128xf32> to vector<8x128xbf16>
    %c0_38 = arith.constant 0 : index
    %c0_39 = arith.constant 0 : index
    %c0_40 = arith.constant 0 : index
    %113 = vector.load %arg5[%c0_38, %c0_39, %c0_40] : memref<1x128x128xbf16, #tpu.memory_space<vmem>>, vector<1x128x128xbf16>
    %114 = vector.shape_cast %113 : vector<1x128x128xbf16> to vector<128x128xbf16>
    %cst_41 = arith.constant dense<0.000000e+00> : vector<8x128xf32>
    %115 = tpu.matmul %112, %114, %cst_41 {dimension_numbers = #tpu.dot_dimension_numbers<[1], [0], [0], [1], [0, 0, 1, 1], [], []>} : vector<8x128xbf16>, vector<128x128xbf16>, vector<8x128xf32> -> vector<8x128xf32>
    %116 = arith.addf %3, %115 : vector<8x128xf32>
    %c0_42 = arith.constant 0 : index
    %c0_43 = arith.constant 0 : index
    %c0_44 = arith.constant 0 : index
    %117 = vector.load %arg6[%c0_42, %c0_43, %c0_44] : memref<1x1x128xf32, #tpu.memory_space<vmem>>, vector<1x1x128xf32>
    %118 = vector.shape_cast %117 : vector<1x1x128xf32> to vector<1x128xf32>
    %119 = arith.mulf %116, %116 : vector<8x128xf32>
    %cst_45 = arith.constant dense<0.000000e+00> : vector<8xf32>
    %120 = vector.multi_reduction <add>, %119, %cst_45 [1] : vector<8x128xf32> to vector<8xf32>
    %121 = vector.shape_cast %120 : vector<8xf32> to vector<8x1xf32>
    %cst_46 = arith.constant 1.280000e+02 : f32
    %122 = vector.broadcast %cst_46 : f32 to vector<8x1xf32>
    %123 = arith.divf %121, %122 : vector<8x1xf32>
    %cst_47 = arith.constant 9.99999997E-7 : f32
    %124 = vector.broadcast %cst_47 : f32 to vector<8x1xf32>
    %125 = arith.addf %123, %124 : vector<8x1xf32>
    %126 = math.rsqrt %125 : vector<8x1xf32>
    %127 = vector.broadcast %126 : vector<8x1xf32> to vector<8x128xf32>
    %128 = arith.mulf %116, %127 : vector<8x128xf32>
    %cst_48 = arith.constant 1.000000e+00 : f32
    %129 = vector.broadcast %cst_48 : f32 to vector<1x128xf32>
    %130 = arith.addf %129, %118 : vector<1x128xf32>
    %131 = vector.broadcast %130 : vector<1x128xf32> to vector<8x128xf32>
    %132 = arith.mulf %128, %131 : vector<8x128xf32>
    %133 = arith.truncf %132 : vector<8x128xf32> to vector<8x128xbf16>
    %c0_49 = arith.constant 0 : index
    %c0_50 = arith.constant 0 : index
    %c0_51 = arith.constant 0 : index
    %134 = vector.load %arg7[%c0_49, %c0_50, %c0_51] : memref<1x128x512xbf16, #tpu.memory_space<vmem>>, vector<1x128x512xbf16>
    %135 = vector.shape_cast %134 : vector<1x128x512xbf16> to vector<128x512xbf16>
    %cst_52 = arith.constant dense<0.000000e+00> : vector<8x512xf32>
    %136 = tpu.matmul %133, %135, %cst_52 {dimension_numbers = #tpu.dot_dimension_numbers<[1], [0], [0], [1], [0, 0, 1, 1], [], []>} : vector<8x128xbf16>, vector<128x512xbf16>, vector<8x512xf32> -> vector<8x512xf32>
    %137 = vector.extract_strided_slice %136 {offsets = [0, 0], sizes = [8, 256], strides = [1, 1]} : vector<8x512xf32> to vector<8x256xf32>
    %138 = vector.extract_strided_slice %136 {offsets = [0, 256], sizes = [8, 256], strides = [1, 1]} : vector<8x512xf32> to vector<8x256xf32>
    %cst_53 = arith.constant 5.000000e-01 : f32
    %139 = vector.broadcast %cst_53 : f32 to vector<8x256xf32>
    %140 = arith.mulf %139, %137 : vector<8x256xf32>
    %cst_54 = arith.constant 4.471500e-02 : f32
    %141 = vector.broadcast %cst_54 : f32 to vector<8x256xf32>
    %142 = arith.mulf %141, %137 : vector<8x256xf32>
    %143 = arith.mulf %142, %137 : vector<8x256xf32>
    %144 = arith.mulf %143, %137 : vector<8x256xf32>
    %145 = arith.addf %137, %144 : vector<8x256xf32>
    %cst_55 = arith.constant 0.797884583 : f32
    %146 = vector.broadcast %cst_55 : f32 to vector<8x256xf32>
    %147 = arith.mulf %146, %145 : vector<8x256xf32>
    %148 = math.tanh %147 : vector<8x256xf32>
    %cst_56 = arith.constant 1.000000e+00 : f32
    %149 = vector.broadcast %cst_56 : f32 to vector<8x256xf32>
    %150 = arith.addf %149, %148 : vector<8x256xf32>
    %151 = arith.mulf %140, %150 : vector<8x256xf32>
    %152 = arith.mulf %151, %138 : vector<8x256xf32>
    %153 = arith.truncf %152 : vector<8x256xf32> to vector<8x256xbf16>
    %c0_57 = arith.constant 0 : index
    %c0_58 = arith.constant 0 : index
    %c0_59 = arith.constant 0 : index
    %154 = vector.load %arg8[%c0_57, %c0_58, %c0_59] : memref<1x256x128xbf16, #tpu.memory_space<vmem>>, vector<1x256x128xbf16>
    %155 = vector.shape_cast %154 : vector<1x256x128xbf16> to vector<256x128xbf16>
    %cst_60 = arith.constant dense<0.000000e+00> : vector<8x128xf32>
    %156 = tpu.matmul %153, %155, %cst_60 {dimension_numbers = #tpu.dot_dimension_numbers<[1], [0], [0], [1], [0, 0, 1, 1], [], []>} : vector<8x256xbf16>, vector<256x128xbf16>, vector<8x128xf32> -> vector<8x128xf32>
    %157 = arith.addf %116, %156 : vector<8x128xf32>
    %c0_61 = arith.constant 0 : index
    %c0_62 = arith.constant 0 : index
    %158 = vector.load %arg16[%c0_61, %c0_62] : memref<8x128xf32, #tpu.memory_space<vmem>>, vector<8x128xf32>
    tpu.vector_store %arg16[%c0_61, %c0_62], %157 {strides = array<i32>} : memref<8x128xf32, #tpu.memory_space<vmem>>, vector<8x128xf32>,
    %c1_i32 = arith.constant 1 : i32
    %159 = arith.cmpi eq, %arg1, %c1_i32 : i32
    %160 = arith.extui %159 : i1 to i32
    %c0_i32_63 = arith.constant 0 : i32
    %161 = arith.cmpi ne, %160, %c0_i32_63 : i32
    scf.if %161 {
      %c0_64 = arith.constant 0 : index
      %c0_65 = arith.constant 0 : index
      %162 = vector.load %arg13[%c0_64, %c0_65] : memref<1x128xf32, #tpu.memory_space<vmem>>, vector<1x128xf32>
      %163 = arith.mulf %157, %157 : vector<8x128xf32>
      %cst_66 = arith.constant dense<0.000000e+00> : vector<8xf32>
      %164 = vector.multi_reduction <add>, %163, %cst_66 [1] : vector<8x128xf32> to vector<8xf32>
      %165 = vector.shape_cast %164 : vector<8xf32> to vector<8x1xf32>
      %cst_67 = arith.constant 1.280000e+02 : f32
      %166 = vector.broadcast %cst_67 : f32 to vector<8x1xf32>
      %167 = arith.divf %165, %166 : vector<8x1xf32>
      %cst_68 = arith.constant 9.99999997E-7 : f32
      %168 = vector.broadcast %cst_68 : f32 to vector<8x1xf32>
      %169 = arith.addf %167, %168 : vector<8x1xf32>
      %170 = math.rsqrt %169 : vector<8x1xf32>
      %171 = vector.broadcast %170 : vector<8x1xf32> to vector<8x128xf32>
      %172 = arith.mulf %157, %171 : vector<8x128xf32>
      %cst_69 = arith.constant 1.000000e+00 : f32
      %173 = vector.broadcast %cst_69 : f32 to vector<1x128xf32>
      %174 = arith.addf %173, %162 : vector<1x128xf32>
      %175 = vector.broadcast %174 : vector<1x128xf32> to vector<8x128xf32>
      %176 = arith.mulf %172, %175 : vector<8x128xf32>
      %177 = arith.truncf %176 : vector<8x128xf32> to vector<8x128xbf16>
      %c0_70 = arith.constant 0 : index
      %c0_71 = arith.constant 0 : index
      %178 = vector.load %arg14[%c0_70, %c0_71] : memref<128x256xbf16, #tpu.memory_space<vmem>>, vector<128x256xbf16>
      %cst_72 = arith.constant dense<0.000000e+00> : vector<8x256xf32>
      %179 = tpu.matmul %177, %178, %cst_72 {dimension_numbers = #tpu.dot_dimension_numbers<[1], [0], [0], [1], [0, 0, 1, 1], [], []>} : vector<8x128xbf16>, vector<128x256xbf16>, vector<8x256xf32> -> vector<8x256xf32>
      %c0_73 = arith.constant 0 : index
      %c0_74 = arith.constant 0 : index
      %180 = vector.load %arg15[%c0_73, %c0_74] : memref<8x256xf32, #tpu.memory_space<vmem>>, vector<8x256xf32>
      tpu.vector_store %arg15[%c0_73, %c0_74], %179 {strides = array<i32>} : memref<8x256xf32, #tpu.memory_space<vmem>>, vector<8x256xf32>,
    } else {
    }
    return
  }
  func.func @transform_0(%arg0: i32, %arg1: i32) -> (i32, i32) {
    %c0_i32 = arith.constant 0 : i32
    %c0_i32_0 = arith.constant 0 : i32
    return %arg0, %c0_i32 : i32, i32
  }
  func.func @transform_1(%arg0: i32, %arg1: i32) -> (i32, i32, i32) {
    %c0_i32 = arith.constant 0 : i32
    %c0_i32_0 = arith.constant 0 : i32
    %c0_i32_1 = arith.constant 0 : i32
    return %arg1, %c0_i32, %c0_i32_0 : i32, i32, i32
  }
  func.func @transform_2(%arg0: i32, %arg1: i32) -> (i32, i32, i32) {
    %c0_i32 = arith.constant 0 : i32
    %c0_i32_0 = arith.constant 0 : i32
    %c0_i32_1 = arith.constant 0 : i32
    return %arg1, %c0_i32, %c0_i32_0 : i32, i32, i32
  }
  func.func @transform_3(%arg0: i32, %arg1: i32) -> (i32, i32, i32) {
    %c0_i32 = arith.constant 0 : i32
    %c0_i32_0 = arith.constant 0 : i32
    %c0_i32_1 = arith.constant 0 : i32
    return %arg1, %c0_i32, %c0_i32_0 : i32, i32, i32
  }
  func.func @transform_4(%arg0: i32, %arg1: i32) -> (i32, i32, i32) {
    %c0_i32 = arith.constant 0 : i32
    %c0_i32_0 = arith.constant 0 : i32
    %c0_i32_1 = arith.constant 0 : i32
    return %arg1, %c0_i32, %c0_i32_0 : i32, i32, i32
  }
  func.func @transform_5(%arg0: i32, %arg1: i32) -> (i32, i32, i32) {
    %c0_i32 = arith.constant 0 : i32
    %c0_i32_0 = arith.constant 0 : i32
    %c0_i32_1 = arith.constant 0 : i32
    return %arg1, %c0_i32, %c0_i32_0 : i32, i32, i32
  }
  func.func @transform_6(%arg0: i32, %arg1: i32) -> (i32, i32, i32) {
    %c0_i32 = arith.constant 0 : i32
    %c0_i32_0 = arith.constant 0 : i32
    %c0_i32_1 = arith.constant 0 : i32
    return %arg1, %c0_i32, %c0_i32_0 : i32, i32, i32
  }
  func.func @transform_7(%arg0: i32, %arg1: i32) -> (i32, i32) {
    %c0_i32 = arith.constant 0 : i32
    %c0_i32_0 = arith.constant 0 : i32
    %c0_i32_1 = arith.constant 0 : i32
    return %c0_i32, %c0_i32_0 : i32, i32
  }
  func.func @transform_8(%arg0: i32, %arg1: i32) -> (i32, i32) {
    %c0_i32 = arith.constant 0 : i32
    %c0_i32_0 = arith.constant 0 : i32
    %c0_i32_1 = arith.constant 0 : i32
    return %c0_i32, %c0_i32_0 : i32, i32
  }
  func.func @transform_9(%arg0: i32, %arg1: i32) -> (i32, i32) {
    %c0_i32 = arith.constant 0 : i32
    %c0_i32_0 = arith.constant 0 : i32
    %c0_i32_1 = arith.constant 0 : i32
    return %c0_i32, %c0_i32_0 : i32, i32
  }
  func.func @transform_10(%arg0: i32, %arg1: i32) -> (i32, i32) {
    %c0_i32 = arith.constant 0 : i32
    %c0_i32_0 = arith.constant 0 : i32
    %c0_i32_1 = arith.constant 0 : i32
    return %c0_i32, %c0_i32_0 : i32, i32
  }
  func.func @transform_11(%arg0: i32, %arg1: i32) -> (i32, i32) {
    %c0_i32 = arith.constant 0 : i32
    %c0_i32_0 = arith.constant 0 : i32
    %c0_i32_1 = arith.constant 0 : i32
    return %c0_i32, %c0_i32_0 : i32, i32
  }
  func.func @transform_12(%arg0: i32, %arg1: i32) -> (i32, i32) {
    %c0_i32 = arith.constant 0 : i32
    %c0_i32_0 = arith.constant 0 : i32
    %c0_i32_1 = arith.constant 0 : i32
    return %c0_i32, %c0_i32_0 : i32, i32
  }
  func.func @transform_13(%arg0: i32, %arg1: i32) -> (i32, i32) {
    %c0_i32 = arith.constant 0 : i32
    %c0_i32_0 = arith.constant 0 : i32
    return %arg0, %c0_i32 : i32, i32
  }
}

</mosaic_0001>

<llo_original>
// kernel: tile.14
$region0: #{tile.14}
  %s0 = inlined_call_operand.vmem [shape: f32[8,4,32], index: 0, kind: input, shape index: {}]
  %s1 = inlined_call_operand.vmem [shape: f32[8,128], index: 1, kind: output, shape index: {}]
  $region1: #{tile.14} parent=0
    #allocation0 [shape = 'u8[32768]{0}', space=vmem, size = 0x8000, scoped, tag = 'scoped mem for input reshape']
    %s3 = sshllo.u32 0, 4
    %s4 = smul.addr 4, 7
    %s5 = scalar_lea.vmem %s0, %s4
    %v6 = vld [vmem:[%s5] sm:%s3]
    %s7 = scalar_lea.vmem [#allocation0], 56
    %8 = vst [vmem:[%s7] sm:%s3] %v6
    %s9 = smul.addr 4, 6
    %s10 = scalar_lea.vmem %s0, %s9
    %v11 = vld [vmem:[%s10] sm:%s3]
    %s12 = scalar_lea.vmem [#allocation0], 48
    %13 = vst [vmem:[%s12] sm:%s3] %v11
    %s14 = smul.addr 4, 5
    %s15 = scalar_lea.vmem %s0, %s14
    %v16 = vld [vmem:[%s15] sm:%s3]
    %s17 = scalar_lea.vmem [#allocation0], 40
    %18 = vst [vmem:[%s17] sm:%s3] %v16
    %s19 = smul.addr 4, 4
    %s20 = scalar_lea.vmem %s0, %s19
    %v21 = vld [vmem:[%s20] sm:%s3]
    %s22 = scalar_lea.vmem [#allocation0], 32
    %23 = vst [vmem:[%s22] sm:%s3] %v21
    %s24 = smul.addr 4, 3
    %s25 = scalar_lea.vmem %s0, %s24
    %v26 = vld [vmem:[%s25] sm:%s3]
    %s27 = scalar_lea.vmem [#allocation0], 24
    %28 = vst [vmem:[%s27] sm:%s3] %v26
    %s29 = smul.addr 4, 2
    %s30 = scalar_lea.vmem %s0, %s29
    %v31 = vld [vmem:[%s30] sm:%s3]
    %s32 = scalar_lea.vmem [#allocation0], 16
    %33 = vst [vmem:[%s32] sm:%s3] %v31
    %s34 = scalar_lea.vmem %s0, 4
    %v35 = vld [vmem:[%s34] sm:%s3]
    %s36 = scalar_lea.vmem [#allocation0], 8
    %37 = vst [vmem:[%s36] sm:%s3] %v35
    %v38 = vld [vmem:[%s0] sm:%s3]
    %39 = vst [vmem:[#allocation0] sm:%s3] %v38
    %v40 = vld [vmem:[#allocation0] ss:$8 sm:$0xf]
    %v41 = vld [vmem:[#allocation0] ss:$8 sm:$0xf0]
    %vm42 = vcmask 1047556
    %v43 = vsel %vm42, %v41, %v40
    %vm44 = vcmask 261120
    %45 = vst.msk [vmem:[%s1] sm:$0xff] %vm44, %v43
    %s46 = scalar_lea.vmem [#allocation0], 3
    %v47 = vld [vmem:[%s46] ss:$8 sm:$0xf]
    %s48 = scalar_lea.vmem [#allocation0], 3
    %v49 = vld [vmem:[%s48] ss:$8 sm:$0xf0]
    %vm50 = vcmask 1047556
    %v51 = vsel %vm50, %v49, %v47
    %52 = vrot.lane.b32.xlu0 %v51, 96
    %v53 = vpop.permute.xlu0 %52
    %vm54 = vcmask 1048320
    %55 = vst.msk [vmem:[%s1] sm:$0xff] %vm54, %v53
    %s56 = scalar_lea.vmem [#allocation0], 2
    %v57 = vld [vmem:[%s56] ss:$8 sm:$0xf]
    %s58 = scalar_lea.vmem [#allocation0], 2
    %v59 = vld [vmem:[%s58] ss:$8 sm:$0xf0]
    %vm60 = vcmask 1047556
    %v61 = vsel %vm60, %v59, %v57
    %62 = vrot.lane.b32.xlu0 %v61, 64
    %v63 = vpop.permute.xlu0 %62
    %vm64 = vcmask 785920
    %65 = vst.msk [vmem:[%s1] sm:$0xff] %vm64, %v63
    %s66 = scalar_lea.vmem [#allocation0], 1
    %v67 = vld [vmem:[%s66] ss:$8 sm:$0xf]
    %s68 = scalar_lea.vmem [#allocation0], 1
    %v69 = vld [vmem:[%s68] ss:$8 sm:$0xf0]
    %vm70 = vcmask 1047556
    %v71 = vsel %vm70, %v69, %v67
    %72 = vrot.lane.b32.xlu0 %v71, 32
    %v73 = vpop.permute.xlu0 %72
    %vm74 = vcmask 523520
    %75 = vst.msk [vmem:[%s1] sm:$0xff] %vm74, %v73

// kernel: gemma_forward.1
$region0: #{gemma_forward.1}
  #allocation0 [shape = 'u32[]', space=smem, size = 0x4, offset = 0x4, fixed_abs, tag = 'smem constant byte address 0x4 - core index']
  #allocation1 [shape = 'u32[144,128]{1,0:T(1,128)}', space=vmem, size = 0x12000, scoped, tag = 'internal scratch']
  #allocation2 [shape = 'f32[8,128]{1,0:T(8,128)}', space=vmem, size = 0x1000, scoped, tag = 'scratch operand']
  %s0 = inlined_call_operand.vmem [shape: f32[16,128], index: 0, kind: input, shape index: {}]
  %s1 = inlined_call_operand.vmem [shape: f32[2,1,128], index: 1, kind: input, shape index: {}]
  %s2 = inlined_call_operand.hbm [shape: bf16[2,128,384], index: 2, kind: input, shape index: {}]
  %s3 = inlined_call_operand.hbm [shape: bf16[2,128,128], index: 3, kind: input, shape index: {}]
  %s4 = inlined_call_operand.vmem [shape: f32[2,1,128], index: 4, kind: input, shape index: {}]
  %s5 = inlined_call_operand.vmem [shape: bf16[2,128,512], index: 5, kind: input, shape index: {}]
  %s6 = inlined_call_operand.hbm [shape: bf16[2,256,128], index: 6, kind: input, shape index: {}]
  %s7 = inlined_call_operand.vmem [shape: f32[8,128], index: 7, kind: input, shape index: {}]
  %s8 = inlined_call_operand.vmem [shape: f32[8,128], index: 8, kind: input, shape index: {}]
  %s9 = inlined_call_operand.vmem [shape: f32[8,32], index: 9, kind: input, shape index: {}]
  %s10 = inlined_call_operand.vmem [shape: f32[8,32], index: 10, kind: input, shape index: {}]
  %s11 = inlined_call_operand.vmem [shape: f32[1,128], index: 11, kind: input, shape index: {}]
  %s12 = inlined_call_operand.hbm [shape: bf16[128,256], index: 12, kind: input, shape index: {}]
  %s13 = inlined_call_operand.hbm [shape: f32[16,256], index: 13, kind: output, shape index: {}]
  %s14 = sld [smem:[#allocation0]]
  $region109: #{gemma_forward.1} parent=0
    _
  %s16 = ssub.s32 1, %s14
  %s17 = scalar_select 0, %s16, %s14
  $region1: #{gemma_forward.1} parent=0
    #allocation3 [shape = 'u8[196608]{0}', space=vmem, size = 0x30000, scoped, tag = 'input window, operand 2']
    #allocation4 [shape = 's32[2]{0}', space=sflag, size = 0x8, scoped, tag = 'scoped memory for gemma_forward.1']
    #allocation5 [shape = 's32[2]{0}', space=sflag, size = 0x8, scoped, tag = 'scoped memory for gemma_forward.1']
    #allocation6 [shape = 'u8[65536]{0}', space=vmem, size = 0x10000, scoped, tag = 'input window, operand 3']
    #allocation7 [shape = 's32[2]{0}', space=sflag, size = 0x8, scoped, tag = 'scoped memory for gemma_forward.1']
    #allocation8 [shape = 'u8[131072]{0}', space=vmem, size = 0x20000, scoped, tag = 'input window, operand 6']
    #allocation9 [shape = 'u8[65536]{0}', space=vmem, size = 0x10000, scoped, tag = 'input window, operand 12, single buffered']
    #allocation10 [shape = 's32[1]{0}', space=sflag, size = 0x4, scoped, tag = 'scoped memory for gemma_forward.1']
    #allocation11 [shape = 'u8[16384]{0}', space=vmem, size = 0x4000, scoped, tag = 'output window, operand 0']
    %18 = vsyncpa [#allocation4], 0
    %s19 = scalar_lea.sflag [#allocation4], 1
    %20 = vsyncpa %s19, 0
    %21 = vsyncpa [#allocation7], 0
    %s22 = scalar_lea.sflag [#allocation7], 1
    %23 = vsyncpa %s22, 0
    %24 = vsyncpa [#allocation10], 0
    %25 = vsyncpa [#allocation5], 0
    %s26 = scalar_lea.sflag [#allocation5], 1
    %27 = vsyncpa %s26, 0
    loop: start=0, step=1, limit=6
    $region2: #{gemma_forward.1} parent=1 // loop_pre_header
      _
    $region3: #{gemma_forward.1} parent=1 // loop_header
      %s29 = sphi 0, %s33
      %p30 = scmp.ge.s32.totalorder %s29, 6
      %s36 = sphi 0, %s48
      %s37 = sphi 0, %s44
      %s38 = sphi 0, %s36
      %s39 = sphi 0, %s37
      %s40 = sphi 0, %s38
      %s41 = sphi 0, %s39
      %s51 = sphi 0, %s53
      %s54 = sphi 0, %s51
      %s55 = sphi 0, %s54
      %s71 = sphi 0, %s55
      %s77 = sphi 0, %s79
      %s80 = sphi 0, %s77
      %s81 = sphi 0, %s80
      %s97 = sphi 0, %s81
      %s103 = sphi 0, %s105
      %s106 = sphi 0, %s103
      %s107 = sphi 0, %s106
      %s123 = sphi 0, %s107
      %s129 = sphi 0, %s131
      %s132 = sphi 0, %s129
      %s133 = sphi 0, %s132
      %s149 = sphi 0, %s133
      %s155 = sphi 0, %s157
      %s158 = sphi 0, %s155
      %s159 = sphi 0, %s158
      %s175 = sphi 0, %s159
      %s181 = sphi 0, %s183
      %s184 = sphi 0, %s181
      %s185 = sphi 0, %s184
      %s201 = sphi 0, %s185
      %s207 = sphi 0, %s209
      %s210 = sphi 0, %s207
      %s211 = sphi 0, %s210
      %s227 = sphi 0, %s211
      %s231 = sphi 0, %s231
      %s233 = sphi 0, %s231
      %s234 = sphi 0, %s233
      %s248 = sphi 0, %s234
      %s252 = sphi 0, %s252
      %s254 = sphi 0, %s252
      %s255 = sphi 0, %s254
      %s269 = sphi 0, %s255
      %s273 = sphi 0, %s273
      %s275 = sphi 0, %s273
      %s276 = sphi 0, %s275
      %s290 = sphi 0, %s276
      %s294 = sphi 0, %s294
      %s296 = sphi 0, %s294
      %s297 = sphi 0, %s296
      %s311 = sphi 0, %s297
      %s315 = sphi 0, %s315
      %s317 = sphi 0, %s315
      %s318 = sphi 0, %s317
      %s332 = sphi 0, %s318
      %s336 = sphi 0, %s336
      %s338 = sphi 0, %s336
      %s339 = sphi 0, %s338
      %s353 = sphi 0, %s339
      %s359 = sphi 0, %s361
      %s362 = sphi 0, %s359
      %s363 = sphi 0, %s362
      %s379 = sphi 0, %s363
    $region4: #{gemma_forward.1} parent=1 // loop_header_branch
      %32 = sbr.rel (%p30) target = $region8
    $region5: #{gemma_forward.1} parent=1 // loop_body
      %s34 = ssub.s32 %s29, 1
      %s35 = ssub.s32 %s29, 2
      %s42 = sadd.s32 1, %s37
      %p43 = scmp.ge.s32.totalorder %s42, 2
      %s44 = scalar_select %p43, 0, %s42
      %s45 = sadd.s32 1, %s36
      %s46 = scalar_select %p43, %s45, %s36
      %p47 = scmp.ge.s32.totalorder %s46, 2
      %s48 = scalar_select %p47, 0, %s46
      %s49 = ssub.s32 %s36, %s48
      %p50 = scmp.eq.s32.totalorder %s49, 0
      %s52 = sadd.s32 %s51, 1
      %s53 = scalar_select %p50, %s51, %s52
      %p56 = pneg %p50
      %p57 = scmp.eq.s32.totalorder %s29, 3
      %p58 = por %p56, %p57
      %p59 = scmp.ne.s32.totalorder %s51, %s54
      %p60 = scmp.eq.s32.totalorder %s29, 0
      %p61 = por %p59, %p60
      %p62 = scmp.ne.s32.totalorder %s51, %s54
      %p63 = scmp.eq.s32.totalorder %s34, 3
      %p64 = por %p62, %p63
      %p65 = scmp.ne.s32.totalorder %s54, %s55
      %p66 = scmp.eq.s32.totalorder %s34, 0
      %p67 = por %p65, %p66
      %p68 = scmp.ne.s32.totalorder %s54, %s55
      %p69 = scmp.eq.s32.totalorder %s35, 3
      %p70 = por %p68, %p69
      %p72 = scmp.ne.s32.totalorder %s55, %s71
      %p73 = scmp.eq.s32.totalorder %s35, 0
      %p74 = por %p72, %p73
      %s75 = ssub.s32 %s37, %s44
      %p76 = scmp.eq.s32.totalorder %s75, 0
      %s78 = sadd.s32 %s77, 1
      %s79 = scalar_select %p76, %s77, %s78
      %p82 = pneg %p76
      %p83 = scmp.eq.s32.totalorder %s29, 3
      %p84 = por %p82, %p83
      %p85 = scmp.ne.s32.totalorder %s77, %s80
      %p86 = scmp.eq.s32.totalorder %s29, 0
      %p87 = por %p85, %p86
      %p88 = scmp.ne.s32.totalorder %s77, %s80
      %p89 = scmp.eq.s32.totalorder %s34, 3
      %p90 = por %p88, %p89
      %p91 = scmp.ne.s32.totalorder %s80, %s81
      %p92 = scmp.eq.s32.totalorder %s34, 0
      %p93 = por %p91, %p92
      %p94 = scmp.ne.s32.totalorder %s80, %s81
      %p95 = scmp.eq.s32.totalorder %s35, 3
      %p96 = por %p94, %p95
      %p98 = scmp.ne.s32.totalorder %s81, %s97
      %p99 = scmp.eq.s32.totalorder %s35, 0
      %p100 = por %p98, %p99
      %s101 = ssub.s32 %s37, %s44
      %p102 = scmp.eq.s32.totalorder %s101, 0
      %s104 = sadd.s32 %s103, 1
      %s105 = scalar_select %p102, %s103, %s104
      %p108 = pneg %p102
      %p109 = scmp.eq.s32.totalorder %s29, 3
      %p110 = por %p108, %p109
      %p111 = scmp.ne.s32.totalorder %s103, %s106
      %p112 = scmp.eq.s32.totalorder %s29, 0
      %p113 = por %p111, %p112
      %p114 = scmp.ne.s32.totalorder %s103, %s106
      %p115 = scmp.eq.s32.totalorder %s34, 3
      %p116 = por %p114, %p115
      %p117 = scmp.ne.s32.totalorder %s106, %s107
      %p118 = scmp.eq.s32.totalorder %s34, 0
      %p119 = por %p117, %p118
      %p120 = scmp.ne.s32.totalorder %s106, %s107
      %p121 = scmp.eq.s32.totalorder %s35, 3
      %p122 = por %p120, %p121
      %p124 = scmp.ne.s32.totalorder %s107, %s123
      %p125 = scmp.eq.s32.totalorder %s35, 0
      %p126 = por %p124, %p125
      %s127 = ssub.s32 %s37, %s44
      %p128 = scmp.eq.s32.totalorder %s127, 0
      %s130 = sadd.s32 %s129, 1
      %s131 = scalar_select %p128, %s129, %s130
      %p134 = pneg %p128
      %p135 = scmp.eq.s32.totalorder %s29, 3
      %p136 = por %p134, %p135
      %p137 = scmp.ne.s32.totalorder %s129, %s132
      %p138 = scmp.eq.s32.totalorder %s29, 0
      %p139 = por %p137, %p138
      %p140 = scmp.ne.s32.totalorder %s129, %s132
      %p141 = scmp.eq.s32.totalorder %s34, 3
      %p142 = por %p140, %p141
      %p143 = scmp.ne.s32.totalorder %s132, %s133
      %p144 = scmp.eq.s32.totalorder %s34, 0
      %p145 = por %p143, %p144
      %p146 = scmp.ne.s32.totalorder %s132, %s133
      %p147 = scmp.eq.s32.totalorder %s35, 3
      %p148 = por %p146, %p147
      %p150 = scmp.ne.s32.totalorder %s133, %s149
      %p151 = scmp.eq.s32.totalorder %s35, 0
      %p152 = por %p150, %p151
      %s153 = ssub.s32 %s37, %s44
      %p154 = scmp.eq.s32.totalorder %s153, 0
      %s156 = sadd.s32 %s155, 1
      %s157 = scalar_select %p154, %s155, %s156
      %p160 = pneg %p154
      %p161 = scmp.eq.s32.totalorder %s29, 3
      %p162 = por %p160, %p161
      %p163 = scmp.ne.s32.totalorder %s155, %s158
      %p164 = scmp.eq.s32.totalorder %s29, 0
      %p165 = por %p163, %p164
      %p166 = scmp.ne.s32.totalorder %s155, %s158
      %p167 = scmp.eq.s32.totalorder %s34, 3
      %p168 = por %p166, %p167
      %p169 = scmp.ne.s32.totalorder %s158, %s159
      %p170 = scmp.eq.s32.totalorder %s34, 0
      %p171 = por %p169, %p170
      %p172 = scmp.ne.s32.totalorder %s158, %s159
      %p173 = scmp.eq.s32.totalorder %s35, 3
      %p174 = por %p172, %p173
      %p176 = scmp.ne.s32.totalorder %s159, %s175
      %p177 = scmp.eq.s32.totalorder %s35, 0
      %p178 = por %p176, %p177
      %s179 = ssub.s32 %s37, %s44
      %p180 = scmp.eq.s32.totalorder %s179, 0
      %s182 = sadd.s32 %s181, 1
      %s183 = scalar_select %p180, %s181, %s182
      %p186 = pneg %p180
      %p187 = scmp.eq.s32.totalorder %s29, 3
      %p188 = por %p186, %p187
      %p189 = scmp.ne.s32.totalorder %s181, %s184
      %p190 = scmp.eq.s32.totalorder %s29, 0
      %p191 = por %p189, %p190
      %p192 = scmp.ne.s32.totalorder %s181, %s184
      %p193 = scmp.eq.s32.totalorder %s34, 3
      %p194 = por %p192, %p193
      %p195 = scmp.ne.s32.totalorder %s184, %s185
      %p196 = scmp.eq.s32.totalorder %s34, 0
      %p197 = por %p195, %p196
      %p198 = scmp.ne.s32.totalorder %s184, %s185
      %p199 = scmp.eq.s32.totalorder %s35, 3
      %p200 = por %p198, %p199
      %p202 = scmp.ne.s32.totalorder %s185, %s201
      %p203 = scmp.eq.s32.totalorder %s35, 0
      %p204 = por %p202, %p203
      %s205 = ssub.s32 %s37, %s44
      %p206 = scmp.eq.s32.totalorder %s205, 0
      %s208 = sadd.s32 %s207, 1
      %s209 = scalar_select %p206, %s207, %s208
      %p212 = pneg %p206
      %p213 = scmp.eq.s32.totalorder %s29, 3
      %p214 = por %p212, %p213
      %p215 = scmp.ne.s32.totalorder %s207, %s210
      %p216 = scmp.eq.s32.totalorder %s29, 0
      %p217 = por %p215, %p216
      %p218 = scmp.ne.s32.totalorder %s207, %s210
      %p219 = scmp.eq.s32.totalorder %s34, 3
      %p220 = por %p218, %p219
      %p221 = scmp.ne.s32.totalorder %s210, %s211
      %p222 = scmp.eq.s32.totalorder %s34, 0
      %p223 = por %p221, %p222
      %p224 = scmp.ne.s32.totalorder %s210, %s211
      %p225 = scmp.eq.s32.totalorder %s35, 3
      %p226 = por %p224, %p225
      %p228 = scmp.ne.s32.totalorder %s211, %s227
      %p229 = scmp.eq.s32.totalorder %s35, 0
      %p230 = por %p228, %p229
      %s232 = sadd.s32 %s231, 1
      %p235 = scmp.eq.s32.totalorder %s29, 3
      %p236 = scmp.ne.s32.totalorder %s231, %s233
      %p237 = scmp.eq.s32.totalorder %s29, 0
      %p238 = por %p236, %p237
      %p239 = scmp.ne.s32.totalorder %s231, %s233
      %p240 = scmp.eq.s32.totalorder %s34, 3
      %p241 = por %p239, %p240
      %p242 = scmp.ne.s32.totalorder %s233, %s234
      %p243 = scmp.eq.s32.totalorder %s34, 0
      %p244 = por %p242, %p243
      %p245 = scmp.ne.s32.totalorder %s233, %s234
      %p246 = scmp.eq.s32.totalorder %s35, 3
      %p247 = por %p245, %p246
      %p249 = scmp.ne.s32.totalorder %s234, %s248
      %p250 = scmp.eq.s32.totalorder %s35, 0
      %p251 = por %p249, %p250
      %s253 = sadd.s32 %s252, 1
      %p256 = scmp.eq.s32.totalorder %s29, 3
      %p257 = scmp.ne.s32.totalorder %s252, %s254
      %p258 = scmp.eq.s32.totalorder %s29, 0
      %p259 = por %p257, %p258
      %p260 = scmp.ne.s32.totalorder %s252, %s254
      %p261 = scmp.eq.s32.totalorder %s34, 3
      %p262 = por %p260, %p261
      %p263 = scmp.ne.s32.totalorder %s254, %s255
      %p264 = scmp.eq.s32.totalorder %s34, 0
      %p265 = por %p263, %p264
      %p266 = scmp.ne.s32.totalorder %s254, %s255
      %p267 = scmp.eq.s32.totalorder %s35, 3
      %p268 = por %p266, %p267
      %p270 = scmp.ne.s32.totalorder %s255, %s269
      %p271 = scmp.eq.s32.totalorder %s35, 0
      %p272 = por %p270, %p271
      %s274 = sadd.s32 %s273, 1
      %p277 = scmp.eq.s32.totalorder %s29, 3
      %p278 = scmp.ne.s32.totalorder %s273, %s275
      %p279 = scmp.eq.s32.totalorder %s29, 0
      %p280 = por %p278, %p279
      %p281 = scmp.ne.s32.totalorder %s273, %s275
      %p282 = scmp.eq.s32.totalorder %s34, 3
      %p283 = por %p281, %p282
      %p284 = scmp.ne.s32.totalorder %s275, %s276
      %p285 = scmp.eq.s32.totalorder %s34, 0
      %p286 = por %p284, %p285
      %p287 = scmp.ne.s32.totalorder %s275, %s276
      %p288 = scmp.eq.s32.totalorder %s35, 3
      %p289 = por %p287, %p288
      %p291 = scmp.ne.s32.totalorder %s276, %s290
      %p292 = scmp.eq.s32.totalorder %s35, 0
      %p293 = por %p291, %p292
      %s295 = sadd.s32 %s294, 1
      %p298 = scmp.eq.s32.totalorder %s29, 3
      %p299 = scmp.ne.s32.totalorder %s294, %s296
      %p300 = scmp.eq.s32.totalorder %s29, 0
      %p301 = por %p299, %p300
      %p302 = scmp.ne.s32.totalorder %s294, %s296
      %p303 = scmp.eq.s32.totalorder %s34, 3
      %p304 = por %p302, %p303
      %p305 = scmp.ne.s32.totalorder %s296, %s297
      %p306 = scmp.eq.s32.totalorder %s34, 0
      %p307 = por %p305, %p306
      %p308 = scmp.ne.s32.totalorder %s296, %s297
      %p309 = scmp.eq.s32.totalorder %s35, 3
      %p310 = por %p308, %p309
      %p312 = scmp.ne.s32.totalorder %s297, %s311
      %p313 = scmp.eq.s32.totalorder %s35, 0
      %p314 = por %p312, %p313
      %s316 = sadd.s32 %s315, 1
      %p319 = scmp.eq.s32.totalorder %s29, 3
      %p320 = scmp.ne.s32.totalorder %s315, %s317
      %p321 = scmp.eq.s32.totalorder %s29, 0
      %p322 = por %p320, %p321
      %p323 = scmp.ne.s32.totalorder %s315, %s317
      %p324 = scmp.eq.s32.totalorder %s34, 3
      %p325 = por %p323, %p324
      %p326 = scmp.ne.s32.totalorder %s317, %s318
      %p327 = scmp.eq.s32.totalorder %s34, 0
      %p328 = por %p326, %p327
      %p329 = scmp.ne.s32.totalorder %s317, %s318
      %p330 = scmp.eq.s32.totalorder %s35, 3
      %p331 = por %p329, %p330
      %p333 = scmp.ne.s32.totalorder %s318, %s332
      %p334 = scmp.eq.s32.totalorder %s35, 0
      %p335 = por %p333, %p334
      %s337 = sadd.s32 %s336, 1
      %p340 = scmp.eq.s32.totalorder %s29, 3
      %p341 = scmp.ne.s32.totalorder %s336, %s338
      %p342 = scmp.eq.s32.totalorder %s29, 0
      %p343 = por %p341, %p342
      %p344 = scmp.ne.s32.totalorder %s336, %s338
      %p345 = scmp.eq.s32.totalorder %s34, 3
      %p346 = por %p344, %p345
      %p347 = scmp.ne.s32.totalorder %s338, %s339
      %p348 = scmp.eq.s32.totalorder %s34, 0
      %p349 = por %p347, %p348
      %p350 = scmp.ne.s32.totalorder %s338, %s339
      %p351 = scmp.eq.s32.totalorder %s35, 3
      %p352 = por %p350, %p351
      %p354 = scmp.ne.s32.totalorder %s339, %s353
      %p355 = scmp.eq.s32.totalorder %s35, 0
      %p356 = por %p354, %p355
      %s357 = ssub.s32 %s36, %s48
      %p358 = scmp.eq.s32.totalorder %s357, 0
      %s360 = sadd.s32 %s359, 1
      %s361 = scalar_select %p358, %s359, %s360
      %p364 = pneg %p358
      %p365 = scmp.eq.s32.totalorder %s29, 3
      %p366 = por %p364, %p365
      %p367 = scmp.ne.s32.totalorder %s359, %s362
      %p368 = scmp.eq.s32.totalorder %s29, 0
      %p369 = por %p367, %p368
      %p370 = scmp.ne.s32.totalorder %s359, %s362
      %p371 = scmp.eq.s32.totalorder %s34, 3
      %p372 = por %p370, %p371
      %p373 = scmp.ne.s32.totalorder %s362, %s363
      %p374 = scmp.eq.s32.totalorder %s34, 0
      %p375 = por %p373, %p374
      %p376 = scmp.ne.s32.totalorder %s362, %s363
      %p377 = scmp.eq.s32.totalorder %s35, 3
      %p378 = por %p376, %p377
      %p380 = scmp.ne.s32.totalorder %s363, %s379
      %p381 = scmp.eq.s32.totalorder %s35, 0
      %p382 = por %p380, %p381
      %p383 = scmp.le.s32.totalorder 1, %s29
      %p384 = scmp.lt.s32.totalorder %s29, 5
      %p385 = pnand %p383, %p384
      %p386 = pneg %p385
      // Predicated region
      $region9: #{gemma_forward.1} parent=5 // pred_check
        _
      $region10: #{gemma_forward.1} parent=5 // pred_check_branch
        %388 = sbr.rel (%p385) target = $region12
      $region11: #{gemma_forward.1} parent=5 // pred_region
        %s389 = ssub.s32 %s29, 1
        // Predicated region
        $region13: #{gemma_forward.1} parent=11 // pred_check
          %p390 = pneg %p244
        $region14: #{gemma_forward.1} parent=11 // pred_check_branch
          %392 = sbr.rel (%p390) target = $region16
        $region15: #{gemma_forward.1} parent=11 // pred_region
          _
        $region16: #{gemma_forward.1} parent=11 // pred_fallthru
          _
        // Predicated region
        $region17: #{gemma_forward.1} parent=11 // pred_check
          %p393 = pneg %p265
        $region18: #{gemma_forward.1} parent=11 // pred_check_branch
          %395 = sbr.rel (%p393) target = $region20
        $region19: #{gemma_forward.1} parent=11 // pred_region
          _
        $region20: #{gemma_forward.1} parent=11 // pred_fallthru
          _
        // Predicated region
        $region21: #{gemma_forward.1} parent=11 // pred_check
          %p396 = pneg %p286
        $region22: #{gemma_forward.1} parent=11 // pred_check_branch
          %398 = sbr.rel (%p396) target = $region24
        $region23: #{gemma_forward.1} parent=11 // pred_region
          _
        $region24: #{gemma_forward.1} parent=11 // pred_fallthru
          _
        // Predicated region
        $region25: #{gemma_forward.1} parent=11 // pred_check
          %p399 = pneg %p307
        $region26: #{gemma_forward.1} parent=11 // pred_check_branch
          %401 = sbr.rel (%p399) target = $region28
        $region27: #{gemma_forward.1} parent=11 // pred_region
          _
        $region28: #{gemma_forward.1} parent=11 // pred_fallthru
          _
        // Predicated region
        $region29: #{gemma_forward.1} parent=11 // pred_check
          %p402 = pneg %p328
        $region30: #{gemma_forward.1} parent=11 // pred_check_branch
          %404 = sbr.rel (%p402) target = $region32
        $region31: #{gemma_forward.1} parent=11 // pred_region
          _
        $region32: #{gemma_forward.1} parent=11 // pred_fallthru
          _
        // Predicated region
        $region33: #{gemma_forward.1} parent=11 // pred_check
          %p405 = pneg %p349
        $region34: #{gemma_forward.1} parent=11 // pred_check_branch
          %407 = sbr.rel (%p405) target = $region36
        $region35: #{gemma_forward.1} parent=11 // pred_region
          %s409 = ssub.s32 2048, 2048
          %410 = vsyncadd [#allocation10], %s409
          %s411 = sshll.u32 [#allocation9], 4
          %s412 = int_to_ptr.vmem [resolvable:$true] %s411
          %417 = dma.hbm_to_vmem [thread:$0]  %s12, 2048, %s412, [#allocation10], 128, 128, 8
        $region36: #{gemma_forward.1} parent=11 // pred_fallthru
          _
      $region12: #{gemma_forward.1} parent=5 // pred_fallthru
        _
      %p418 = scmp.lt.s32.totalorder %s29, 4
      // Predicated region
      $region37: #{gemma_forward.1} parent=5 // pred_check
        %p419 = pneg %p418
      $region38: #{gemma_forward.1} parent=5 // pred_check_branch
        %421 = sbr.rel (%p419) target = $region40
      $region39: #{gemma_forward.1} parent=5 // pred_region
        // Predicated region
        $region41: #{gemma_forward.1} parent=39 // pred_check
          %p422 = pneg %p61
        $region42: #{gemma_forward.1} parent=39 // pred_check_branch
          %424 = sbr.rel (%p422) target = $region44
        $region43: #{gemma_forward.1} parent=39 // pred_region
          %p425 = scmp.lt.s32.totalorder %s36, 1
          %s426 = scalar_select %p425, %s36, 1
          %s427 = smul.addr %s426, 8
          %s428 = scalar_lea.vmem %s0, %s427
        $region44: #{gemma_forward.1} parent=39 // pred_fallthru
          _
        // Predicated region
        $region45: #{gemma_forward.1} parent=39 // pred_check
          %p429 = pneg %p87
        $region46: #{gemma_forward.1} parent=39 // pred_check_branch
          %431 = sbr.rel (%p429) target = $region48
        $region47: #{gemma_forward.1} parent=39 // pred_region
          %p432 = scmp.lt.s32.totalorder %s37, 1
          %s433 = scalar_select %p432, %s37, 1
          %s434 = scalar_lea.vmem %s1, %s433
        $region48: #{gemma_forward.1} parent=39 // pred_fallthru
          _
        // Predicated region
        $region49: #{gemma_forward.1} parent=39 // pred_check
          %p435 = pneg %p113
        $region50: #{gemma_forward.1} parent=39 // pred_check_branch
          %437 = sbr.rel (%p435) target = $region52
        $region51: #{gemma_forward.1} parent=39 // pred_region
          %s438 = sand.u32 %s103, 1
          %s439 = scalar_lea.sflag [#allocation4], %s438
          %s440 = sand.u32 %s103, 1
          %s441 = smul.addr %s440, 192
          %s442 = scalar_lea.vmem [#allocation3], %s441
          %s444 = ssub.s32 3072, 3072
          %445 = vsyncadd %s439, %s444
          %s446 = smul.addr %s37, 48
          %s447 = smul.addr %s446, 64
          %s448 = scalar_lea.hbm %s2, %s447
          %s449 = sshll.u32 %s442, 4
          %s450 = int_to_ptr.vmem [resolvable:$true] %s449
          %455 = dma.hbm_to_vmem [thread:$0]  %s448, 3072, %s450, %s439, 192, 192, 12
        $region52: #{gemma_forward.1} parent=39 // pred_fallthru
          _
        // Predicated region
        $region53: #{gemma_forward.1} parent=39 // pred_check
          %p456 = pneg %p139
        $region54: #{gemma_forward.1} parent=39 // pred_check_branch
          %458 = sbr.rel (%p456) target = $region56
        $region55: #{gemma_forward.1} parent=39 // pred_region
          %s459 = sand.u32 %s29, 1
          %s460 = scalar_lea.sflag [#allocation7], %s459
          %s461 = sand.u32 %s129, 1
          %s462 = smul.addr %s461, 64
          %s463 = scalar_lea.vmem [#allocation6], %s462
          %s465 = ssub.s32 1024, 1024
          %466 = vsyncadd %s460, %s465
          %s467 = smul.addr %s37, 16
          %s468 = smul.addr %s467, 64
          %s469 = scalar_lea.hbm %s3, %s468
          %s470 = sshll.u32 %s463, 4
          %s471 = int_to_ptr.vmem [resolvable:$true] %s470
          %476 = dma.hbm_to_vmem [thread:$0]  %s469, 1024, %s471, %s460, 64, 64, 4
        $region56: #{gemma_forward.1} parent=39 // pred_fallthru
          _
        // Predicated region
        $region57: #{gemma_forward.1} parent=39 // pred_check
          %p477 = pneg %p165
        $region58: #{gemma_forward.1} parent=39 // pred_check_branch
          %479 = sbr.rel (%p477) target = $region60
        $region59: #{gemma_forward.1} parent=39 // pred_region
          %p480 = scmp.lt.s32.totalorder %s37, 1
          %s481 = scalar_select %p480, %s37, 1
          %s482 = scalar_lea.vmem %s4, %s481
        $region60: #{gemma_forward.1} parent=39 // pred_fallthru
          _
        // Predicated region
        $region61: #{gemma_forward.1} parent=39 // pred_check
          %p483 = pneg %p191
        $region62: #{gemma_forward.1} parent=39 // pred_check_branch
          %485 = sbr.rel (%p483) target = $region64
        $region63: #{gemma_forward.1} parent=39 // pred_region
          %p486 = scmp.lt.s32.totalorder %s37, 1
          %s487 = scalar_select %p486, %s37, 1
          %s488 = smul.addr %s487, 64
          %s489 = smul.addr %s488, 4
          %s490 = scalar_lea.vmem %s5, %s489
        $region64: #{gemma_forward.1} parent=39 // pred_fallthru
          _
        // Predicated region
        $region65: #{gemma_forward.1} parent=39 // pred_check
          %p491 = pneg %p217
        $region66: #{gemma_forward.1} parent=39 // pred_check_branch
          %493 = sbr.rel (%p491) target = $region68
        $region67: #{gemma_forward.1} parent=39 // pred_region
          %s494 = sand.u32 %s29, 1
          %s495 = scalar_lea.sflag [#allocation7], %s494
          %s496 = sand.u32 %s207, 1
          %s497 = smul.addr %s496, 128
          %s498 = scalar_lea.vmem [#allocation8], %s497
          %s500 = ssub.s32 2048, 2048
          %501 = vsyncadd %s495, %s500
          %s502 = smul.addr %s37, 32
          %s503 = smul.addr %s502, 64
          %s504 = scalar_lea.hbm %s6, %s503
          %s505 = sshll.u32 %s498, 4
          %s506 = int_to_ptr.vmem [resolvable:$true] %s505
          %511 = dma.hbm_to_vmem [thread:$0]  %s504, 2048, %s506, %s495, 64, 64, 4
        $region68: #{gemma_forward.1} parent=39 // pred_fallthru
          _
      $region40: #{gemma_forward.1} parent=5 // pred_fallthru
        _
      %p512 = scmp.le.s32.totalorder 1, %s29
      %p513 = scmp.lt.s32.totalorder %s29, 5
      %p514 = pnand %p512, %p513
      %p515 = pneg %p514
      // Predicated region
      $region69: #{gemma_forward.1} parent=5 // pred_check
        _
      $region70: #{gemma_forward.1} parent=5 // pred_check_branch
        %517 = sbr.rel (%p514) target = $region72
      $region71: #{gemma_forward.1} parent=5 // pred_region
        %s518 = ssub.s32 %s29, 1
        %s519 = sand.u32 %s106, 1
        %s520 = scalar_lea.sflag [#allocation4], %s519
        %s521 = sand.u32 %s106, 1
        %s522 = smul.addr %s521, 192
        %s523 = scalar_lea.vmem [#allocation3], %s522
        // Predicated region
        $region73: #{gemma_forward.1} parent=71 // pred_check
          %p524 = pneg %p119
        $region74: #{gemma_forward.1} parent=71 // pred_check_branch
          %526 = sbr.rel (%p524) target = $region76
        $region75: #{gemma_forward.1} parent=71 // pred_region
          %527 = dma.done %s520, 3072
        $region76: #{gemma_forward.1} parent=71 // pred_fallthru
          _
        %s528 = sand.u32 %s34, 1
        %s529 = scalar_lea.sflag [#allocation7], %s528
        %s530 = sand.u32 %s132, 1
        %s531 = smul.addr %s530, 64
        %s532 = scalar_lea.vmem [#allocation6], %s531
        // Predicated region
        $region77: #{gemma_forward.1} parent=71 // pred_check
          %p533 = pneg %p145
        $region78: #{gemma_forward.1} parent=71 // pred_check_branch
          %535 = sbr.rel (%p533) target = $region80
        $region79: #{gemma_forward.1} parent=71 // pred_region
          %536 = dma.done %s529, 1024
        $region80: #{gemma_forward.1} parent=71 // pred_fallthru
          _
        %s537 = sand.u32 %s34, 1
        %s538 = scalar_lea.sflag [#allocation7], %s537
        %s539 = sand.u32 %s210, 1
        %s540 = smul.addr %s539, 128
        %s541 = scalar_lea.vmem [#allocation8], %s540
        // Predicated region
        $region81: #{gemma_forward.1} parent=71 // pred_check
          %p542 = pneg %p223
        $region82: #{gemma_forward.1} parent=71 // pred_check_branch
          %544 = sbr.rel (%p542) target = $region84
        $region83: #{gemma_forward.1} parent=71 // pred_region
          %545 = dma.done %s538, 2048
        $region84: #{gemma_forward.1} parent=71 // pred_fallthru
          _
        // Predicated region
        $region85: #{gemma_forward.1} parent=71 // pred_check
          %p546 = pneg %p349
        $region86: #{gemma_forward.1} parent=71 // pred_check_branch
          %548 = sbr.rel (%p546) target = $region88
        $region87: #{gemma_forward.1} parent=71 // pred_region
          %549 = dma.done [#allocation10], 2048
        $region88: #{gemma_forward.1} parent=71 // pred_fallthru
          _
        %p550 = scmp.lt.s32.totalorder %s38, 1
        %s551 = scalar_select %p550, %s38, 1
        %s552 = smul.addr %s551, 8
        %s553 = scalar_lea.vmem %s0, %s552
        %p554 = pneg %p67
        %p555 = pneg %p64
        %p556 = scmp.lt.s32.totalorder %s39, 1
        %s557 = scalar_select %p556, %s39, 1
        %s558 = scalar_lea.vmem %s1, %s557
        %p559 = pneg %p93
        %p560 = pneg %p90
        %s561 = sand.u32 %s106, 1
        %s562 = scalar_lea.sflag [#allocation4], %s561
        %s563 = sand.u32 %s106, 1
        %s564 = smul.addr %s563, 192
        %s565 = scalar_lea.vmem [#allocation3], %s564
        %p566 = pneg %p119
        %p567 = pneg %p116
        %s568 = sand.u32 %s34, 1
        %s569 = scalar_lea.sflag [#allocation7], %s568
        %s570 = sand.u32 %s132, 1
        %s571 = smul.addr %s570, 64
        %s572 = scalar_lea.vmem [#allocation6], %s571
        %p573 = pneg %p145
        %p574 = pneg %p142
        %p575 = scmp.lt.s32.totalorder %s39, 1
        %s576 = scalar_select %p575, %s39, 1
        %s577 = scalar_lea.vmem %s4, %s576
        %p578 = pneg %p171
        %p579 = pneg %p168
        %p580 = scmp.lt.s32.totalorder %s39, 1
        %s581 = scalar_select %p580, %s39, 1
        %s582 = smul.addr %s581, 64
        %s583 = smul.addr %s582, 4
        %s584 = scalar_lea.vmem %s5, %s583
        %p585 = pneg %p197
        %p586 = pneg %p194
        %s587 = sand.u32 %s34, 1
        %s588 = scalar_lea.sflag [#allocation7], %s587
        %s589 = sand.u32 %s210, 1
        %s590 = smul.addr %s589, 128
        %s591 = scalar_lea.vmem [#allocation8], %s590
        %p592 = pneg %p223
        %p593 = pneg %p220
        %p594 = pneg %p244
        %p595 = pneg %p241
        %p596 = pneg %p265
        %p597 = pneg %p262
        %p598 = pneg %p286
        %p599 = pneg %p283
        %p600 = pneg %p307
        %p601 = pneg %p304
        %p602 = pneg %p328
        %p603 = pneg %p325
        %p604 = pneg %p349
        %p605 = pneg %p346
        %p606 = pneg %p375
        %p607 = pneg %p372
        %s608 = sand.u32 %s362, 1
        %s609 = scalar_lea.sflag [#allocation5], %s608
        %s610 = sand.u32 %s362, 1
        %s611 = smul.addr %s610, 16
        %s612 = scalar_lea.vmem [#allocation11], %s611
        %p613 = scmp.lt.s32.totalorder %s38, 1
        %s614 = scalar_select %p613, %s38, 1
        %s615 = smul.addr %s614, 8
        %s616 = scalar_lea.vmem %s0, %s615
        %p617 = scmp.lt.s32.totalorder %s39, 1
        %s618 = scalar_select %p617, %s39, 1
        %s619 = scalar_lea.vmem %s1, %s618
        %p620 = scmp.lt.s32.totalorder %s39, 1
        %s621 = scalar_select %p620, %s39, 1
        %s622 = scalar_lea.vmem %s4, %s621
        %p623 = scmp.lt.s32.totalorder %s39, 1
        %s624 = scalar_select %p623, %s39, 1
        %s625 = smul.addr %s624, 64
        %s626 = smul.addr %s625, 4
        %s627 = scalar_lea.vmem %s5, %s626
        %p629 = scmp.eq.s32.totalorder %s39, 0
        // Predicated region
        $region89: #{gemma_forward.1} parent=71 // pred_check
          %p630 = pneg %p629
        $region90: #{gemma_forward.1} parent=71 // pred_check_branch
          %632 = sbr.rel (%p630) target = $region92
        $region91: #{gemma_forward.1} parent=71 // pred_region
          %v633 = vld [vmem:[%s616] sm:$0xff]
          %634 = vst [vmem:[#allocation2] sm:$0xff] %v633
        $region92: #{gemma_forward.1} parent=71 // pred_fallthru
          _
        %v635 = vld [vmem:[#allocation2] sm:$0xff]
        %v636 = vld [vmem:[%s619] sm:$0x1]
        %v637 = vmul.f32 %v635, %v635
        %638 = vadd.xlane.f32.xlu0 %v637
        %v639 = vpop.xlane.xlu0 %638
        %v640 = vrcp.pop 128.0
        %v641 = vmul.f32 %v639, %v640
        %v642 = vadd.f32 %v641, 1e-06
        %v643 = vrsqrt.pop %v642
        %v644 = vmul.f32 %v635, %v643
        %v645 = vadd.f32 %v636, 1.0
        %v647 = vlaneseq
        %v648 = vshrl.u32 %v647, 7
        %v649 = vsub.s32 0, %v648
        %v650 = vrot.slane %v645, %v649
        %v652 = vmul.f32 %v644, %v650
        %v653 = vpack.c.bf16 %v652, %v652
        %v654 = vld [vmem:[%s523] sm:$0xff]
        %v655 = vld [vmem:[%s523 + $0x8] sm:$0xf]
        %v656 = vld [vmem:[%s523 + $0xc] sm:$0xff]
        %v657 = vld [vmem:[%s523 + $0x14] sm:$0xf]
        %v658 = vld [vmem:[%s523 + $0x18] sm:$0xff]
        %v659 = vld [vmem:[%s523 + $0x20] sm:$0xf]
        %v660 = vld [vmem:[%s523 + $0x24] sm:$0xff]
        %v661 = vld [vmem:[%s523 + $0x2c] sm:$0xf]
        %v662 = vld [vmem:[%s523 + $0x30] sm:$0xff]
        %v663 = vld [vmem:[%s523 + $0x38] sm:$0xf]
        %v664 = vld [vmem:[%s523 + $0x3c] sm:$0xff]
        %v665 = vld [vmem:[%s523 + $0x44] sm:$0xf]
        %v666 = vld [vmem:[%s523 + $0x48] sm:$0xff]
        %v667 = vld [vmem:[%s523 + $0x50] sm:$0xf]
        %v668 = vld [vmem:[%s523 + $0x54] sm:$0xff]
        %v669 = vld [vmem:[%s523 + $0x5c] sm:$0xf]
        %v670 = vld [vmem:[%s523 + $0x60] sm:$0xff]
        %v671 = vld [vmem:[%s523 + $0x68] sm:$0xf]
        %v672 = vld [vmem:[%s523 + $0x6c] sm:$0xff]
        %v673 = vld [vmem:[%s523 + $0x74] sm:$0xf]
        %v674 = vld [vmem:[%s523 + $0x78] sm:$0xff]
        %v675 = vld [vmem:[%s523 + $0x80] sm:$0xf]
        %v676 = vld [vmem:[%s523 + $0x84] sm:$0xff]
        %v677 = vld [vmem:[%s523 + $0x8c] sm:$0xf]
        %v678 = vld [vmem:[%s523 + $0x90] sm:$0xff]
        %v679 = vld [vmem:[%s523 + $0x98] sm:$0xf]
        %v680 = vld [vmem:[%s523 + $0x9c] sm:$0xff]
        %v681 = vld [vmem:[%s523 + $0xa4] sm:$0xf]
        %v682 = vld [vmem:[%s523 + $0xa8] sm:$0xff]
        %v683 = vld [vmem:[%s523 + $0xb0] sm:$0xf]
        %v684 = vld [vmem:[%s523 + $0xb4] sm:$0xff]
        %v685 = vld [vmem:[%s523 + $0xbc] sm:$0xf]
        %v718 = vunpack.c.l.b16 %v654
        %v719 = vunpack.c.h.b16 %v654
        %v720 = vunpack.c.l.b16 %v655
        %v721 = vunpack.c.l.b16 %v656
        %v722 = vunpack.c.h.b16 %v656
        %v723 = vunpack.c.l.b16 %v657
        %v724 = vunpack.c.l.b16 %v658
        %v725 = vunpack.c.h.b16 %v658
        %v726 = vunpack.c.l.b16 %v659
        %v727 = vunpack.c.l.b16 %v660
        %v728 = vunpack.c.h.b16 %v660
        %v729 = vunpack.c.l.b16 %v661
        %v730 = vunpack.c.l.b16 %v662
        %v731 = vunpack.c.h.b16 %v662
        %v732 = vunpack.c.l.b16 %v663
        %v733 = vunpack.c.l.b16 %v664
        %v734 = vunpack.c.h.b16 %v664
        %v735 = vunpack.c.l.b16 %v665
        %v736 = vunpack.c.l.b16 %v666
        %v737 = vunpack.c.h.b16 %v666
        %v738 = vunpack.c.l.b16 %v667
        %v739 = vunpack.c.l.b16 %v668
        %v740 = vunpack.c.h.b16 %v668
        %v741 = vunpack.c.l.b16 %v669
        %v742 = vunpack.c.l.b16 %v670
        %v743 = vunpack.c.h.b16 %v670
        %v744 = vunpack.c.l.b16 %v671
        %v745 = vunpack.c.l.b16 %v672
        %v746 = vunpack.c.h.b16 %v672
        %v747 = vunpack.c.l.b16 %v673
        %v748 = vunpack.c.l.b16 %v674
        %v749 = vunpack.c.h.b16 %v674
        %v750 = vunpack.c.l.b16 %v675
        %v751 = vunpack.c.l.b16 %v676
        %v752 = vunpack.c.h.b16 %v676
        %v753 = vunpack.c.l.b16 %v677
        %v754 = vunpack.c.l.b16 %v678
        %v755 = vunpack.c.h.b16 %v678
        %v756 = vunpack.c.l.b16 %v679
        %v757 = vunpack.c.l.b16 %v680
        %v758 = vunpack.c.h.b16 %v680
        %v759 = vunpack.c.l.b16 %v681
        %v760 = vunpack.c.l.b16 %v682
        %v761 = vunpack.c.h.b16 %v682
        %v762 = vunpack.c.l.b16 %v683
        %v763 = vunpack.c.l.b16 %v684
        %v764 = vunpack.c.h.b16 %v684
        %v765 = vunpack.c.l.b16 %v685
        %v766 = vpack.c.b16 %v721, %v718
        %v767 = vpack.c.b16 %v722, %v719
        %v768 = vpack.c.b16 %v723, %v720
        %v769 = vpack.c.b16 %v727, %v724
        %v770 = vpack.c.b16 %v728, %v725
        %v771 = vpack.c.b16 %v729, %v726
        %v772 = vpack.c.b16 %v733, %v730
        %v773 = vpack.c.b16 %v734, %v731
        %v774 = vpack.c.b16 %v735, %v732
        %v775 = vpack.c.b16 %v739, %v736
        %v776 = vpack.c.b16 %v740, %v737
        %v777 = vpack.c.b16 %v741, %v738
        %v778 = vpack.c.b16 %v745, %v742
        %v779 = vpack.c.b16 %v746, %v743
        %v780 = vpack.c.b16 %v747, %v744
        %v781 = vpack.c.b16 %v751, %v748
        %v782 = vpack.c.b16 %v752, %v749
        %v783 = vpack.c.b16 %v753, %v750
        %v784 = vpack.c.b16 %v757, %v754
        %v785 = vpack.c.b16 %v758, %v755
        %v786 = vpack.c.b16 %v759, %v756
        %v787 = vpack.c.b16 %v763, %v760
        %v788 = vpack.c.b16 %v764, %v761
        %v789 = vpack.c.b16 %v765, %v762
        %814 = vmatprep.subr.bf16.mxu0 %v767
        %815 = vmatpush1.bf16.msra.mxu0 %v766
        %816 = vmatprep.subr.bf16.mxu0 %v770
        %817 = vmatpush1.bf16.msra.mxu0 %v769
        %818 = vmatprep.subr.bf16.mxu0 %v773
        %819 = vmatpush1.bf16.msra.mxu0 %v772
        %820 = vmatprep.subr.bf16.mxu0 %v776
        %821 = vmatpush1.bf16.msra.mxu0 %v775
        %822 = vmatprep.subr.bf16.mxu0 %v779
        %823 = vmatpush1.bf16.msra.mxu0 %v778
        %824 = vmatprep.subr.bf16.mxu0 %v782
        %825 = vmatpush1.bf16.msra.mxu0 %v781
        %826 = vmatprep.subr.bf16.mxu0 %v785
        %827 = vmatpush1.bf16.msra.mxu0 %v784
        %828 = vmatprep.subr.bf16.mxu0 %v788
        %829 = vmatpush1.bf16.msra.mxu0 %v787
        %830 = vmatprep.subr.bf16.mxu0 0
        %831 = vmatpush1.bf16.msra.mxu0 0
        %832 = vmatprep.subr.bf16.mxu0 0
        %833 = vmatpush1.bf16.msra.mxu0 0
        %834 = vmatprep.subr.bf16.mxu0 0
        %835 = vmatpush1.bf16.msra.mxu0 0
        %836 = vmatprep.subr.bf16.mxu0 0
        %837 = vmatpush1.bf16.msra.mxu0 0
        %838 = vmatprep.subr.bf16.mxu0 0
        %839 = vmatpush1.bf16.msra.mxu0 0
        %840 = vmatprep.subr.bf16.mxu0 0
        %841 = vmatpush1.bf16.msra.mxu0 0
        %842 = vmatprep.subr.bf16.mxu0 0
        %843 = vmatpush1.bf16.msra.mxu0 0
        %844 = vmatprep.subr.bf16.mxu0 0
        %845 = vmatpush1.bf16.msra.mxu0 0
        %846 = vmatprep.mubr.bf16.mxu0 0
        %847 = vmatmul.mubr.bf16.gmra.mrb[0].mxu0 %v653
        %v848 = vpop.f32.mrb[0].mxu0
        %v849 = vadd.f32 0.0, %v848
        %v850 = vpop.f32.mrb[0].mxu0
        %v851 = vadd.f32 0.0, %v850
        %v852 = vpop.f32.mrb[0].mxu0
        %v853 = vpop.f32.mrb[0].mxu0
        %854 = vdwg.mxu0
        %855 = vmatprep.subr.bf16.mxu0 0
        %856 = vmatpush1.bf16.msra.mxu0 %v768
        %857 = vmatprep.subr.bf16.mxu0 0
        %858 = vmatpush1.bf16.msra.mxu0 %v771
        %859 = vmatprep.subr.bf16.mxu0 0
        %860 = vmatpush1.bf16.msra.mxu0 %v774
        %861 = vmatprep.subr.bf16.mxu0 0
        %862 = vmatpush1.bf16.msra.mxu0 %v777
        %863 = vmatprep.subr.bf16.mxu0 0
        %864 = vmatpush1.bf16.msra.mxu0 %v780
        %865 = vmatprep.subr.bf16.mxu0 0
        %866 = vmatpush1.bf16.msra.mxu0 %v783
        %867 = vmatprep.subr.bf16.mxu0 0
        %868 = vmatpush1.bf16.msra.mxu0 %v786
        %869 = vmatprep.subr.bf16.mxu0 0
        %870 = vmatpush1.bf16.msra.mxu0 %v789
        %871 = vmatprep.subr.bf16.mxu0 0
        %872 = vmatpush1.bf16.msra.mxu0 0
        %873 = vmatprep.subr.bf16.mxu0 0
        %874 = vmatpush1.bf16.msra.mxu0 0
        %875 = vmatprep.subr.bf16.mxu0 0
        %876 = vmatpush1.bf16.msra.mxu0 0
        %877 = vmatprep.subr.bf16.mxu0 0
        %878 = vmatpush1.bf16.msra.mxu0 0
        %879 = vmatprep.subr.bf16.mxu0 0
        %880 = vmatpush1.bf16.msra.mxu0 0
        %881 = vmatprep.subr.bf16.mxu0 0
        %882 = vmatpush1.bf16.msra.mxu0 0
        %883 = vmatprep.subr.bf16.mxu0 0
        %884 = vmatpush1.bf16.msra.mxu0 0
        %885 = vmatprep.subr.bf16.mxu0 0
        %886 = vmatpush1.bf16.msra.mxu0 0
        %887 = vmatprep.mubr.bf16.mxu0 0
        %888 = vmatmul.mubr.bf16.gmra.mrb[0].mxu0 %v653
        %v889 = vpop.f32.mrb[0].mxu0
        %v890 = vadd.f32 0.0, %v889
        %v891 = vpop.f32.mrb[0].mxu0
        %v892 = vpop.f32.mrb[0].mxu0
        %v893 = vpop.f32.mrb[0].mxu0
        %894 = vdwg.mxu0
        %v895 = vld [vmem:[%s7] sm:$0xff]
        %v896 = vmul.f32 %v849, %v895
        %v897 = vld [vmem:[%s8] sm:$0xff]
        %v898 = vmul.f32 %v851, %v897
        %v899 = vadd.f32 %v896, %v898
        %v900 = vld [vmem:[%s9] sm:$0xff]
        %v901 = vmul.f32 %v890, %v900
        %v902 = vld [vmem:[%s10] sm:$0xff]
        %904 = vrot.lane.b32.xlu0 %v902, 32
        %v905 = vpop.permute.xlu0 %904
        %v907 = vmul.f32 %v890, %v905
        %909 = vrot.lane.b32.xlu0 %v907, 96
        %v910 = vpop.permute.xlu0 %909
        %v912 = vadd.f32 %v901, %v910
        %v913 = vpack.c.bf16 %v912, %v912
        %v914 = vpack.c.bf16 %v890, %v890
        %v915 = vlaneseq
        %v916 = vshrl.u32 %v915, 7
        %v917 = vlaneseq
        %v918 = vand.u32 %v917, 127
        %vm919 = vcmp.le.s32.totalorder %v918, %v916
        %v920 = vsel %vm919, 0.0, -1e+30
        %v921 = vpack.c.bf16 %v899, %v899
        %vm922 = vcmask 261120
        %v924 = vsel %vm922, %v921, 0
        %v927 = vsel %vm922, %v913, 0
        %929 = vmatprep.subr.bf16.mxu0 0
        %930 = vmatpush1.bf16.xpose.msra.mxu0 %v927
        %931 = vmatprep.subr.bf16.mxu0 0
        %932 = vmatpush1.bf16.xpose.msra.mxu0 0
        %933 = vmatprep.subr.bf16.mxu0 0
        %934 = vmatpush1.bf16.xpose.msra.mxu0 0
        %935 = vmatprep.subr.bf16.mxu0 0
        %936 = vmatpush1.bf16.xpose.msra.mxu0 0
        %937 = vmatprep.subr.bf16.mxu0 0
        %938 = vmatpush1.bf16.xpose.msra.mxu0 0
        %939 = vmatprep.subr.bf16.mxu0 0
        %940 = vmatpush1.bf16.xpose.msra.mxu0 0
        %941 = vmatprep.subr.bf16.mxu0 0
        %942 = vmatpush1.bf16.xpose.msra.mxu0 0
        %943 = vmatprep.subr.bf16.mxu0 0
        %944 = vmatpush1.bf16.xpose.msra.mxu0 0
        %945 = vmatprep.subr.bf16.mxu0 0
        %946 = vmatpush1.bf16.xpose.msra.mxu0 0
        %947 = vmatprep.subr.bf16.mxu0 0
        %948 = vmatpush1.bf16.xpose.msra.mxu0 0
        %949 = vmatprep.subr.bf16.mxu0 0
        %950 = vmatpush1.bf16.xpose.msra.mxu0 0
        %951 = vmatprep.subr.bf16.mxu0 0
        %952 = vmatpush1.bf16.xpose.msra.mxu0 0
        %953 = vmatprep.subr.bf16.mxu0 0
        %954 = vmatpush1.bf16.xpose.msra.mxu0 0
        %955 = vmatprep.subr.bf16.mxu0 0
        %956 = vmatpush1.bf16.xpose.msra.mxu0 0
        %957 = vmatprep.subr.bf16.mxu0 0
        %958 = vmatpush1.bf16.xpose.msra.mxu0 0
        %959 = vmatprep.subr.bf16.mxu0 0
        %960 = vmatpush1.bf16.xpose.msra.mxu0 0
        %961 = vmatprep.mubr.bf16.mxu0 0
        %962 = vmatmul.mubr.bf16.gmra.mrb[0].mxu0 %v924
        %v963 = vpop.f32.mrb[0].mxu0
        %v964 = vadd.f32 %v920, %v963
        %v965 = vpop.f32.mrb[0].mxu0
        %v966 = vpop.f32.mrb[0].mxu0
        %v967 = vpop.f32.mrb[0].mxu0
        %968 = vdwg.mxu0
        %vm969 = vcmask 64512
        %v970 = vsel %vm969, %v964, -inf
        %971 = vmax.xlane.f32.xlu0 %v970
        %v972 = vpop.xlane.xlu0 %971
        %v973 = vsub.f32 %v964, %v972
        %v974 = vmul.f32 %v973, 1.442695
        %v975 = vpow.pop %v974
        %v976 = vsel %vm969, %v975, 0.0
        %977 = vadd.xlane.f32.xlu0 %v976
        %v978 = vpop.xlane.xlu0 %977
        %v979 = vrcp.pop %v978
        %v980 = vmul.f32 %v975, %v979
        %v981 = vpack.c.bf16 %v980, %v980
        %983 = vrot.lane.b32.xlu0 %v914, 64
        %v984 = vpop.permute.xlu0 %983
        %v986 = vsel %vm969, %v981, 0
        %vm988 = vcmask 1043456
        %v990 = vsel %vm988, %v984, 0
        %992 = vmatprep.subr.bf16.mxu0 0
        %993 = vmatpush1.bf16.msra.mxu0 %v990
        %994 = vmatprep.subr.bf16.mxu0 0
        %995 = vmatpush1.bf16.msra.mxu0 0
        %996 = vmatprep.subr.bf16.mxu0 0
        %997 = vmatpush1.bf16.msra.mxu0 0
        %998 = vmatprep.subr.bf16.mxu0 0
        %999 = vmatpush1.bf16.msra.mxu0 0
        %1000 = vmatprep.subr.bf16.mxu0 0
        %1001 = vmatpush1.bf16.msra.mxu0 0
        %1002 = vmatprep.subr.bf16.mxu0 0
        %1003 = vmatpush1.bf16.msra.mxu0 0
        %1004 = vmatprep.subr.bf16.mxu0 0
        %1005 = vmatpush1.bf16.msra.mxu0 0
        %1006 = vmatprep.subr.bf16.mxu0 0
        %1007 = vmatpush1.bf16.msra.mxu0 0
        %1008 = vmatprep.subr.bf16.mxu0 0
        %1009 = vmatpush1.bf16.msra.mxu0 0
        %1010 = vmatprep.subr.bf16.mxu0 0
        %1011 = vmatpush1.bf16.msra.mxu0 0
        %1012 = vmatprep.subr.bf16.mxu0 0
        %1013 = vmatpush1.bf16.msra.mxu0 0
        %1014 = vmatprep.subr.bf16.mxu0 0
        %1015 = vmatpush1.bf16.msra.mxu0 0
        %1016 = vmatprep.subr.bf16.mxu0 0
        %1017 = vmatpush1.bf16.msra.mxu0 0
        %1018 = vmatprep.subr.bf16.mxu0 0
        %1019 = vmatpush1.bf16.msra.mxu0 0
        %1020 = vmatprep.subr.bf16.mxu0 0
        %1021 = vmatpush1.bf16.msra.mxu0 0
        %1022 = vmatprep.subr.bf16.mxu0 0
        %1023 = vmatpush1.bf16.msra.mxu0 0
        %1024 = vmatprep.mubr.bf16.mxu0 0
        %1025 = vmatmul.mubr.bf16.gmra.mrb[0].mxu0 %v986
        %v1026 = vpop.f32.mrb[0].mxu0
        %v1027 = vadd.f32 0.0, %v1026
        %v1028 = vpop.f32.mrb[0].mxu0
        %v1029 = vpop.f32.mrb[0].mxu0
        %v1030 = vpop.f32.mrb[0].mxu0
        %1031 = vdwg.mxu0
        %1033 = vrot.lane.b32.xlu0 %v921, 96
        %v1034 = vpop.permute.xlu0 %1033
        %v1036 = vsel %vm922, %v1034, 0
        %1038 = vmatprep.subr.bf16.mxu0 0
        %1039 = vmatpush1.bf16.xpose.msra.mxu0 %v927
        %1040 = vmatprep.subr.bf16.mxu0 0
        %1041 = vmatpush1.bf16.xpose.msra.mxu0 0
        %1042 = vmatprep.subr.bf16.mxu0 0
        %1043 = vmatpush1.bf16.xpose.msra.mxu0 0
        %1044 = vmatprep.subr.bf16.mxu0 0
        %1045 = vmatpush1.bf16.xpose.msra.mxu0 0
        %1046 = vmatprep.subr.bf16.mxu0 0
        %1047 = vmatpush1.bf16.xpose.msra.mxu0 0
        %1048 = vmatprep.subr.bf16.mxu0 0
        %1049 = vmatpush1.bf16.xpose.msra.mxu0 0
        %1050 = vmatprep.subr.bf16.mxu0 0
        %1051 = vmatpush1.bf16.xpose.msra.mxu0 0
        %1052 = vmatprep.subr.bf16.mxu0 0
        %1053 = vmatpush1.bf16.xpose.msra.mxu0 0
        %1054 = vmatprep.subr.bf16.mxu0 0
        %1055 = vmatpush1.bf16.xpose.msra.mxu0 0
        %1056 = vmatprep.subr.bf16.mxu0 0
        %1057 = vmatpush1.bf16.xpose.msra.mxu0 0
        %1058 = vmatprep.subr.bf16.mxu0 0
        %1059 = vmatpush1.bf16.xpose.msra.mxu0 0
        %1060 = vmatprep.subr.bf16.mxu0 0
        %1061 = vmatpush1.bf16.xpose.msra.mxu0 0
        %1062 = vmatprep.subr.bf16.mxu0 0
        %1063 = vmatpush1.bf16.xpose.msra.mxu0 0
        %1064 = vmatprep.subr.bf16.mxu0 0
        %1065 = vmatpush1.bf16.xpose.msra.mxu0 0
        %1066 = vmatprep.subr.bf16.mxu0 0
        %1067 = vmatpush1.bf16.xpose.msra.mxu0 0
        %1068 = vmatprep.subr.bf16.mxu0 0
        %1069 = vmatpush1.bf16.xpose.msra.mxu0 0
        %1070 = vmatprep.mubr.bf16.mxu0 0
        %1071 = vmatmul.mubr.bf16.gmra.mrb[0].mxu0 %v1036
        %v1072 = vpop.f32.mrb[0].mxu0
        %v1073 = vadd.f32 %v920, %v1072
        %v1074 = vpop.f32.mrb[0].mxu0
        %v1075 = vpop.f32.mrb[0].mxu0
        %v1076 = vpop.f32.mrb[0].mxu0
        %1077 = vdwg.mxu0
        %v1078 = vsel %vm969, %v1073, -inf
        %1079 = vmax.xlane.f32.xlu0 %v1078
        %v1080 = vpop.xlane.xlu0 %1079
        %v1081 = vsub.f32 %v1073, %v1080
        %v1082 = vmul.f32 %v1081, 1.442695
        %v1083 = vpow.pop %v1082
        %v1084 = vsel %vm969, %v1083, 0.0
        %1085 = vadd.xlane.f32.xlu0 %v1084
        %v1086 = vpop.xlane.xlu0 %1085
        %v1087 = vrcp.pop %v1086
        %v1088 = vmul.f32 %v1083, %v1087
        %v1089 = vpack.c.bf16 %v1088, %v1088
        %v1091 = vsel %vm969, %v1089, 0
        %1093 = vmatprep.subr.bf16.mxu0 0
        %1094 = vmatpush1.bf16.msra.mxu0 %v990
        %1095 = vmatprep.subr.bf16.mxu0 0
        %1096 = vmatpush1.bf16.msra.mxu0 0
        %1097 = vmatprep.subr.bf16.mxu0 0
        %1098 = vmatpush1.bf16.msra.mxu0 0
        %1099 = vmatprep.subr.bf16.mxu0 0
        %1100 = vmatpush1.bf16.msra.mxu0 0
        %1101 = vmatprep.subr.bf16.mxu0 0
        %1102 = vmatpush1.bf16.msra.mxu0 0
        %1103 = vmatprep.subr.bf16.mxu0 0
        %1104 = vmatpush1.bf16.msra.mxu0 0
        %1105 = vmatprep.subr.bf16.mxu0 0
        %1106 = vmatpush1.bf16.msra.mxu0 0
        %1107 = vmatprep.subr.bf16.mxu0 0
        %1108 = vmatpush1.bf16.msra.mxu0 0
        %1109 = vmatprep.subr.bf16.mxu0 0
        %1110 = vmatpush1.bf16.msra.mxu0 0
        %1111 = vmatprep.subr.bf16.mxu0 0
        %1112 = vmatpush1.bf16.msra.mxu0 0
        %1113 = vmatprep.subr.bf16.mxu0 0
        %1114 = vmatpush1.bf16.msra.mxu0 0
        %1115 = vmatprep.subr.bf16.mxu0 0
        %1116 = vmatpush1.bf16.msra.mxu0 0
        %1117 = vmatprep.subr.bf16.mxu0 0
        %1118 = vmatpush1.bf16.msra.mxu0 0
        %1119 = vmatprep.subr.bf16.mxu0 0
        %1120 = vmatpush1.bf16.msra.mxu0 0
        %1121 = vmatprep.subr.bf16.mxu0 0
        %1122 = vmatpush1.bf16.msra.mxu0 0
        %1123 = vmatprep.subr.bf16.mxu0 0
        %1124 = vmatpush1.bf16.msra.mxu0 0
        %1125 = vmatprep.mubr.bf16.mxu0 0
        %1126 = vmatmul.mubr.bf16.gmra.mrb[0].mxu0 %v1091
        %v1127 = vpop.f32.mrb[0].mxu0
        %v1128 = vadd.f32 0.0, %v1127
        %v1129 = vpop.f32.mrb[0].mxu0
        %v1130 = vpop.f32.mrb[0].mxu0
        %v1131 = vpop.f32.mrb[0].mxu0
        %1132 = vdwg.mxu0
        %1133 = vrot.lane.b32.xlu0 %v921, 64
        %v1134 = vpop.permute.xlu0 %1133
        %v1136 = vsel %vm922, %v1134, 0
        %1138 = vmatprep.subr.bf16.mxu0 0
        %1139 = vmatpush1.bf16.xpose.msra.mxu0 %v927
        %1140 = vmatprep.subr.bf16.mxu0 0
        %1141 = vmatpush1.bf16.xpose.msra.mxu0 0
        %1142 = vmatprep.subr.bf16.mxu0 0
        %1143 = vmatpush1.bf16.xpose.msra.mxu0 0
        %1144 = vmatprep.subr.bf16.mxu0 0
        %1145 = vmatpush1.bf16.xpose.msra.mxu0 0
        %1146 = vmatprep.subr.bf16.mxu0 0
        %1147 = vmatpush1.bf16.xpose.msra.mxu0 0
        %1148 = vmatprep.subr.bf16.mxu0 0
        %1149 = vmatpush1.bf16.xpose.msra.mxu0 0
        %1150 = vmatprep.subr.bf16.mxu0 0
        %1151 = vmatpush1.bf16.xpose.msra.mxu0 0
        %1152 = vmatprep.subr.bf16.mxu0 0
        %1153 = vmatpush1.bf16.xpose.msra.mxu0 0
        %1154 = vmatprep.subr.bf16.mxu0 0
        %1155 = vmatpush1.bf16.xpose.msra.mxu0 0
        %1156 = vmatprep.subr.bf16.mxu0 0
        %1157 = vmatpush1.bf16.xpose.msra.mxu0 0
        %1158 = vmatprep.subr.bf16.mxu0 0
        %1159 = vmatpush1.bf16.xpose.msra.mxu0 0
        %1160 = vmatprep.subr.bf16.mxu0 0
        %1161 = vmatpush1.bf16.xpose.msra.mxu0 0
        %1162 = vmatprep.subr.bf16.mxu0 0
        %1163 = vmatpush1.bf16.xpose.msra.mxu0 0
        %1164 = vmatprep.subr.bf16.mxu0 0
        %1165 = vmatpush1.bf16.xpose.msra.mxu0 0
        %1166 = vmatprep.subr.bf16.mxu0 0
        %1167 = vmatpush1.bf16.xpose.msra.mxu0 0
        %1168 = vmatprep.subr.bf16.mxu0 0
        %1169 = vmatpush1.bf16.xpose.msra.mxu0 0
        %1170 = vmatprep.mubr.bf16.mxu0 0
        %1171 = vmatmul.mubr.bf16.gmra.mrb[0].mxu0 %v1136
        %v1172 = vpop.f32.mrb[0].mxu0
        %v1173 = vadd.f32 %v920, %v1172
        %v1174 = vpop.f32.mrb[0].mxu0
        %v1175 = vpop.f32.mrb[0].mxu0
        %v1176 = vpop.f32.mrb[0].mxu0
        %1177 = vdwg.mxu0
        %v1178 = vsel %vm969, %v1173, -inf
        %1179 = vmax.xlane.f32.xlu0 %v1178
        %v1180 = vpop.xlane.xlu0 %1179
        %v1181 = vsub.f32 %v1173, %v1180
        %v1182 = vmul.f32 %v1181, 1.442695
        %v1183 = vpow.pop %v1182
        %v1184 = vsel %vm969, %v1183, 0.0
        %1185 = vadd.xlane.f32.xlu0 %v1184
        %v1186 = vpop.xlane.xlu0 %1185
        %v1187 = vrcp.pop %v1186
        %v1188 = vmul.f32 %v1183, %v1187
        %v1189 = vpack.c.bf16 %v1188, %v1188
        %v1191 = vsel %vm969, %v1189, 0
        %1193 = vmatprep.subr.bf16.mxu0 0
        %1194 = vmatpush1.bf16.msra.mxu0 %v990
        %1195 = vmatprep.subr.bf16.mxu0 0
        %1196 = vmatpush1.bf16.msra.mxu0 0
        %1197 = vmatprep.subr.bf16.mxu0 0
        %1198 = vmatpush1.bf16.msra.mxu0 0
        %1199 = vmatprep.subr.bf16.mxu0 0
        %1200 = vmatpush1.bf16.msra.mxu0 0
        %1201 = vmatprep.subr.bf16.mxu0 0
        %1202 = vmatpush1.bf16.msra.mxu0 0
        %1203 = vmatprep.subr.bf16.mxu0 0
        %1204 = vmatpush1.bf16.msra.mxu0 0
        %1205 = vmatprep.subr.bf16.mxu0 0
        %1206 = vmatpush1.bf16.msra.mxu0 0
        %1207 = vmatprep.subr.bf16.mxu0 0
        %1208 = vmatpush1.bf16.msra.mxu0 0
        %1209 = vmatprep.subr.bf16.mxu0 0
        %1210 = vmatpush1.bf16.msra.mxu0 0
        %1211 = vmatprep.subr.bf16.mxu0 0
        %1212 = vmatpush1.bf16.msra.mxu0 0
        %1213 = vmatprep.subr.bf16.mxu0 0
        %1214 = vmatpush1.bf16.msra.mxu0 0
        %1215 = vmatprep.subr.bf16.mxu0 0
        %1216 = vmatpush1.bf16.msra.mxu0 0
        %1217 = vmatprep.subr.bf16.mxu0 0
        %1218 = vmatpush1.bf16.msra.mxu0 0
        %1219 = vmatprep.subr.bf16.mxu0 0
        %1220 = vmatpush1.bf16.msra.mxu0 0
        %1221 = vmatprep.subr.bf16.mxu0 0
        %1222 = vmatpush1.bf16.msra.mxu0 0
        %1223 = vmatprep.subr.bf16.mxu0 0
        %1224 = vmatpush1.bf16.msra.mxu0 0
        %1225 = vmatprep.mubr.bf16.mxu0 0
        %1226 = vmatmul.mubr.bf16.gmra.mrb[0].mxu0 %v1191
        %v1227 = vpop.f32.mrb[0].mxu0
        %v1228 = vadd.f32 0.0, %v1227
        %v1229 = vpop.f32.mrb[0].mxu0
        %v1230 = vpop.f32.mrb[0].mxu0
        %v1231 = vpop.f32.mrb[0].mxu0
        %1232 = vdwg.mxu0
        %1233 = vrot.lane.b32.xlu0 %v921, 32
        %v1234 = vpop.permute.xlu0 %1233
        %v1236 = vsel %vm922, %v1234, 0
        %1238 = vmatprep.subr.bf16.mxu0 0
        %1239 = vmatpush1.bf16.xpose.msra.mxu0 %v927
        %1240 = vmatprep.subr.bf16.mxu0 0
        %1241 = vmatpush1.bf16.xpose.msra.mxu0 0
        %1242 = vmatprep.subr.bf16.mxu0 0
        %1243 = vmatpush1.bf16.xpose.msra.mxu0 0
        %1244 = vmatprep.subr.bf16.mxu0 0
        %1245 = vmatpush1.bf16.xpose.msra.mxu0 0
        %1246 = vmatprep.subr.bf16.mxu0 0
        %1247 = vmatpush1.bf16.xpose.msra.mxu0 0
        %1248 = vmatprep.subr.bf16.mxu0 0
        %1249 = vmatpush1.bf16.xpose.msra.mxu0 0
        %1250 = vmatprep.subr.bf16.mxu0 0
        %1251 = vmatpush1.bf16.xpose.msra.mxu0 0
        %1252 = vmatprep.subr.bf16.mxu0 0
        %1253 = vmatpush1.bf16.xpose.msra.mxu0 0
        %1254 = vmatprep.subr.bf16.mxu0 0
        %1255 = vmatpush1.bf16.xpose.msra.mxu0 0
        %1256 = vmatprep.subr.bf16.mxu0 0
        %1257 = vmatpush1.bf16.xpose.msra.mxu0 0
        %1258 = vmatprep.subr.bf16.mxu0 0
        %1259 = vmatpush1.bf16.xpose.msra.mxu0 0
        %1260 = vmatprep.subr.bf16.mxu0 0
        %1261 = vmatpush1.bf16.xpose.msra.mxu0 0
        %1262 = vmatprep.subr.bf16.mxu0 0
        %1263 = vmatpush1.bf16.xpose.msra.mxu0 0
        %1264 = vmatprep.subr.bf16.mxu0 0
        %1265 = vmatpush1.bf16.xpose.msra.mxu0 0
        %1266 = vmatprep.subr.bf16.mxu0 0
        %1267 = vmatpush1.bf16.xpose.msra.mxu0 0
        %1268 = vmatprep.subr.bf16.mxu0 0
        %1269 = vmatpush1.bf16.xpose.msra.mxu0 0
        %1270 = vmatprep.mubr.bf16.mxu0 0
        %1271 = vmatmul.mubr.bf16.gmra.mrb[0].mxu0 %v1236
        %v1272 = vpop.f32.mrb[0].mxu0
        %v1273 = vadd.f32 %v920, %v1272
        %v1274 = vpop.f32.mrb[0].mxu0
        %v1275 = vpop.f32.mrb[0].mxu0
        %v1276 = vpop.f32.mrb[0].mxu0
        %1277 = vdwg.mxu0
        %v1278 = vsel %vm969, %v1273, -inf
        %1279 = vmax.xlane.f32.xlu0 %v1278
        %v1280 = vpop.xlane.xlu0 %1279
        %v1281 = vsub.f32 %v1273, %v1280
        %v1282 = vmul.f32 %v1281, 1.442695
        %v1283 = vpow.pop %v1282
        %v1284 = vsel %vm969, %v1283, 0.0
        %1285 = vadd.xlane.f32.xlu0 %v1284
        %v1286 = vpop.xlane.xlu0 %1285
        %v1287 = vrcp.pop %v1286
        %v1288 = vmul.f32 %v1283, %v1287
        %v1289 = vpack.c.bf16 %v1288, %v1288
        %v1291 = vsel %vm969, %v1289, 0
        %1293 = vmatprep.subr.bf16.mxu0 0
        %1294 = vmatpush1.bf16.msra.mxu0 %v990
        %1295 = vmatprep.subr.bf16.mxu0 0
        %1296 = vmatpush1.bf16.msra.mxu0 0
        %1297 = vmatprep.subr.bf16.mxu0 0
        %1298 = vmatpush1.bf16.msra.mxu0 0
        %1299 = vmatprep.subr.bf16.mxu0 0
        %1300 = vmatpush1.bf16.msra.mxu0 0
        %1301 = vmatprep.subr.bf16.mxu0 0
        %1302 = vmatpush1.bf16.msra.mxu0 0
        %1303 = vmatprep.subr.bf16.mxu0 0
        %1304 = vmatpush1.bf16.msra.mxu0 0
        %1305 = vmatprep.subr.bf16.mxu0 0
        %1306 = vmatpush1.bf16.msra.mxu0 0
        %1307 = vmatprep.subr.bf16.mxu0 0
        %1308 = vmatpush1.bf16.msra.mxu0 0
        %1309 = vmatprep.subr.bf16.mxu0 0
        %1310 = vmatpush1.bf16.msra.mxu0 0
        %1311 = vmatprep.subr.bf16.mxu0 0
        %1312 = vmatpush1.bf16.msra.mxu0 0
        %1313 = vmatprep.subr.bf16.mxu0 0
        %1314 = vmatpush1.bf16.msra.mxu0 0
        %1315 = vmatprep.subr.bf16.mxu0 0
        %1316 = vmatpush1.bf16.msra.mxu0 0
        %1317 = vmatprep.subr.bf16.mxu0 0
        %1318 = vmatpush1.bf16.msra.mxu0 0
        %1319 = vmatprep.subr.bf16.mxu0 0
        %1320 = vmatpush1.bf16.msra.mxu0 0
        %1321 = vmatprep.subr.bf16.mxu0 0
        %1322 = vmatpush1.bf16.msra.mxu0 0
        %1323 = vmatprep.subr.bf16.mxu0 0
        %1324 = vmatpush1.bf16.msra.mxu0 0
        %1325 = vmatprep.mubr.bf16.mxu0 0
        %1326 = vmatmul.mubr.bf16.gmra.mrb[0].mxu0 %v1291
        %v1327 = vpop.f32.mrb[0].mxu0
        %v1328 = vadd.f32 0.0, %v1327
        %v1329 = vpop.f32.mrb[0].mxu0
        %v1330 = vpop.f32.mrb[0].mxu0
        %v1331 = vpop.f32.mrb[0].mxu0
        %1332 = vdwg.mxu0
        %1334 = vrot.lane.b32.xlu0 %v1128, 32
        %v1335 = vpop.permute.xlu0 %1334
        %1338 = vrot.lane.b32.xlu0 %v1228, 64
        %v1339 = vpop.permute.xlu0 %1338
        %1342 = vrot.lane.b32.xlu0 %v1328, 96
        %v1343 = vpop.permute.xlu0 %1342
        %v1345 = vsel %vm922, %v1027, %v1335
        %vm1346 = vcmask 523264
        %v1347 = vsel %vm1346, %v1345, %v1339
        %vm1348 = vcmask 785408
        %v1349 = vsel %vm1348, %v1347, %v1343
        %v1350 = vpack.c.bf16 %v1349, %v1349
        %v1351 = vld [vmem:[%s532] sm:$0xf]
        %v1352 = vld [vmem:[%s532 + $0x4] sm:$0xf]
        %v1353 = vld [vmem:[%s532 + $0x8] sm:$0xf]
        %v1354 = vld [vmem:[%s532 + $0xc] sm:$0xf]
        %v1355 = vld [vmem:[%s532 + $0x10] sm:$0xf]
        %v1356 = vld [vmem:[%s532 + $0x14] sm:$0xf]
        %v1357 = vld [vmem:[%s532 + $0x18] sm:$0xf]
        %v1358 = vld [vmem:[%s532 + $0x1c] sm:$0xf]
        %v1359 = vld [vmem:[%s532 + $0x20] sm:$0xf]
        %v1360 = vld [vmem:[%s532 + $0x24] sm:$0xf]
        %v1361 = vld [vmem:[%s532 + $0x28] sm:$0xf]
        %v1362 = vld [vmem:[%s532 + $0x2c] sm:$0xf]
        %v1363 = vld [vmem:[%s532 + $0x30] sm:$0xf]
        %v1364 = vld [vmem:[%s532 + $0x34] sm:$0xf]
        %v1365 = vld [vmem:[%s532 + $0x38] sm:$0xf]
        %v1366 = vld [vmem:[%s532 + $0x3c] sm:$0xf]
        %v1383 = vunpack.c.l.b16 %v1351
        %v1384 = vunpack.c.l.b16 %v1352
        %v1385 = vunpack.c.l.b16 %v1353
        %v1386 = vunpack.c.l.b16 %v1354
        %v1387 = vunpack.c.l.b16 %v1355
        %v1388 = vunpack.c.l.b16 %v1356
        %v1389 = vunpack.c.l.b16 %v1357
        %v1390 = vunpack.c.l.b16 %v1358
        %v1391 = vunpack.c.l.b16 %v1359
        %v1392 = vunpack.c.l.b16 %v1360
        %v1393 = vunpack.c.l.b16 %v1361
        %v1394 = vunpack.c.l.b16 %v1362
        %v1395 = vunpack.c.l.b16 %v1363
        %v1396 = vunpack.c.l.b16 %v1364
        %v1397 = vunpack.c.l.b16 %v1365
        %v1398 = vunpack.c.l.b16 %v1366
        %v1399 = vpack.c.b16 %v1384, %v1383
        %v1400 = vpack.c.b16 %v1386, %v1385
        %v1401 = vpack.c.b16 %v1388, %v1387
        %v1402 = vpack.c.b16 %v1390, %v1389
        %v1403 = vpack.c.b16 %v1392, %v1391
        %v1404 = vpack.c.b16 %v1394, %v1393
        %v1405 = vpack.c.b16 %v1396, %v1395
        %v1406 = vpack.c.b16 %v1398, %v1397
        %1415 = vmatprep.subr.bf16.mxu0 0
        %1416 = vmatpush1.bf16.msra.mxu0 %v1399
        %1417 = vmatprep.subr.bf16.mxu0 0
        %1418 = vmatpush1.bf16.msra.mxu0 %v1400
        %1419 = vmatprep.subr.bf16.mxu0 0
        %1420 = vmatpush1.bf16.msra.mxu0 %v1401
        %1421 = vmatprep.subr.bf16.mxu0 0
        %1422 = vmatpush1.bf16.msra.mxu0 %v1402
        %1423 = vmatprep.subr.bf16.mxu0 0
        %1424 = vmatpush1.bf16.msra.mxu0 %v1403
        %1425 = vmatprep.subr.bf16.mxu0 0
        %1426 = vmatpush1.bf16.msra.mxu0 %v1404
        %1427 = vmatprep.subr.bf16.mxu0 0
        %1428 = vmatpush1.bf16.msra.mxu0 %v1405
        %1429 = vmatprep.subr.bf16.mxu0 0
        %1430 = vmatpush1.bf16.msra.mxu0 %v1406
        %1431 = vmatprep.subr.bf16.mxu0 0
        %1432 = vmatpush1.bf16.msra.mxu0 0
        %1433 = vmatprep.subr.bf16.mxu0 0
        %1434 = vmatpush1.bf16.msra.mxu0 0
        %1435 = vmatprep.subr.bf16.mxu0 0
        %1436 = vmatpush1.bf16.msra.mxu0 0
        %1437 = vmatprep.subr.bf16.mxu0 0
        %1438 = vmatpush1.bf16.msra.mxu0 0
        %1439 = vmatprep.subr.bf16.mxu0 0
        %1440 = vmatpush1.bf16.msra.mxu0 0
        %1441 = vmatprep.subr.bf16.mxu0 0
        %1442 = vmatpush1.bf16.msra.mxu0 0
        %1443 = vmatprep.subr.bf16.mxu0 0
        %1444 = vmatpush1.bf16.msra.mxu0 0
        %1445 = vmatprep.subr.bf16.mxu0 0
        %1446 = vmatpush1.bf16.msra.mxu0 0
        %1447 = vmatprep.mubr.bf16.mxu0 0
        %1448 = vmatmul.mubr.bf16.gmra.mrb[0].mxu0 %v1350
        %v1449 = vpop.f32.mrb[0].mxu0
        %v1450 = vadd.f32 0.0, %v1449
        %v1451 = vpop.f32.mrb[0].mxu0
        %v1452 = vpop.f32.mrb[0].mxu0
        %v1453 = vpop.f32.mrb[0].mxu0
        %1454 = vdwg.mxu0
        %v1455 = vadd.f32 %v635, %v1450
        %v1456 = vld [vmem:[%s622] sm:$0x1]
        %v1457 = vmul.f32 %v1455, %v1455
        %1458 = vadd.xlane.f32.xlu0 %v1457
        %v1459 = vpop.xlane.xlu0 %1458
        %v1460 = vmul.f32 %v1459, %v640
        %v1461 = vadd.f32 %v1460, 1e-06
        %v1462 = vrsqrt.pop %v1461
        %v1463 = vmul.f32 %v1455, %v1462
        %v1464 = vadd.f32 %v1456, 1.0
        %v1466 = vlaneseq
        %v1467 = vshrl.u32 %v1466, 7
        %v1468 = vsub.s32 0, %v1467
        %v1469 = vrot.slane %v1464, %v1468
        %v1471 = vmul.f32 %v1463, %v1469
        %v1472 = vpack.c.bf16 %v1471, %v1471
        %v1473 = vld [vmem:[%s627] sm:$0xff]
        %v1474 = vld [vmem:[%s627 + $0x8] sm:$0xff]
        %v1475 = vld [vmem:[%s627 + $0x10] sm:$0xff]
        %v1476 = vld [vmem:[%s627 + $0x18] sm:$0xff]
        %v1477 = vld [vmem:[%s627 + $0x20] sm:$0xff]
        %v1478 = vld [vmem:[%s627 + $0x28] sm:$0xff]
        %v1479 = vld [vmem:[%s627 + $0x30] sm:$0xff]
        %v1480 = vld [vmem:[%s627 + $0x38] sm:$0xff]
        %v1481 = vld [vmem:[%s627 + $0x40] sm:$0xff]
        %v1482 = vld [vmem:[%s627 + $0x48] sm:$0xff]
        %v1483 = vld [vmem:[%s627 + $0x50] sm:$0xff]
        %v1484 = vld [vmem:[%s627 + $0x58] sm:$0xff]
        %v1485 = vld [vmem:[%s627 + $0x60] sm:$0xff]
        %v1486 = vld [vmem:[%s627 + $0x68] sm:$0xff]
        %v1487 = vld [vmem:[%s627 + $0x70] sm:$0xff]
        %v1488 = vld [vmem:[%s627 + $0x78] sm:$0xff]
        %v1489 = vld [vmem:[%s627 + $0x80] sm:$0xff]
        %v1490 = vld [vmem:[%s627 + $0x88] sm:$0xff]
        %v1491 = vld [vmem:[%s627 + $0x90] sm:$0xff]
        %v1492 = vld [vmem:[%s627 + $0x98] sm:$0xff]
        %v1493 = vld [vmem:[%s627 + $0xa0] sm:$0xff]
        %v1494 = vld [vmem:[%s627 + $0xa8] sm:$0xff]
        %v1495 = vld [vmem:[%s627 + $0xb0] sm:$0xff]
        %v1496 = vld [vmem:[%s627 + $0xb8] sm:$0xff]
        %v1497 = vld [vmem:[%s627 + $0xc0] sm:$0xff]
        %v1498 = vld [vmem:[%s627 + $0xc8] sm:$0xff]
        %v1499 = vld [vmem:[%s627 + $0xd0] sm:$0xff]
        %v1500 = vld [vmem:[%s627 + $0xd8] sm:$0xff]
        %v1501 = vld [vmem:[%s627 + $0xe0] sm:$0xff]
        %v1502 = vld [vmem:[%s627 + $0xe8] sm:$0xff]
        %v1503 = vld [vmem:[%s627 + $0xf0] sm:$0xff]
        %v1504 = vld [vmem:[%s627 + $0xf8] sm:$0xff]
        %v1537 = vunpack.c.l.b16 %v1473
        %v1538 = vunpack.c.h.b16 %v1473
        %v1539 = vunpack.c.l.b16 %v1474
        %v1540 = vunpack.c.h.b16 %v1474
        %v1541 = vunpack.c.l.b16 %v1475
        %v1542 = vunpack.c.h.b16 %v1475
        %v1543 = vunpack.c.l.b16 %v1476
        %v1544 = vunpack.c.h.b16 %v1476
        %v1545 = vunpack.c.l.b16 %v1477
        %v1546 = vunpack.c.h.b16 %v1477
        %v1547 = vunpack.c.l.b16 %v1478
        %v1548 = vunpack.c.h.b16 %v1478
        %v1549 = vunpack.c.l.b16 %v1479
        %v1550 = vunpack.c.h.b16 %v1479
        %v1551 = vunpack.c.l.b16 %v1480
        %v1552 = vunpack.c.h.b16 %v1480
        %v1553 = vunpack.c.l.b16 %v1481
        %v1554 = vunpack.c.h.b16 %v1481
        %v1555 = vunpack.c.l.b16 %v1482
        %v1556 = vunpack.c.h.b16 %v1482
        %v1557 = vunpack.c.l.b16 %v1483
        %v1558 = vunpack.c.h.b16 %v1483
        %v1559 = vunpack.c.l.b16 %v1484
        %v1560 = vunpack.c.h.b16 %v1484
        %v1561 = vunpack.c.l.b16 %v1485
        %v1562 = vunpack.c.h.b16 %v1485
        %v1563 = vunpack.c.l.b16 %v1486
        %v1564 = vunpack.c.h.b16 %v1486
        %v1565 = vunpack.c.l.b16 %v1487
        %v1566 = vunpack.c.h.b16 %v1487
        %v1567 = vunpack.c.l.b16 %v1488
        %v1568 = vunpack.c.h.b16 %v1488
        %v1569 = vunpack.c.l.b16 %v1489
        %v1570 = vunpack.c.h.b16 %v1489
        %v1571 = vunpack.c.l.b16 %v1490
        %v1572 = vunpack.c.h.b16 %v1490
        %v1573 = vunpack.c.l.b16 %v1491
        %v1574 = vunpack.c.h.b16 %v1491
        %v1575 = vunpack.c.l.b16 %v1492
        %v1576 = vunpack.c.h.b16 %v1492
        %v1577 = vunpack.c.l.b16 %v1493
        %v1578 = vunpack.c.h.b16 %v1493
        %v1579 = vunpack.c.l.b16 %v1494
        %v1580 = vunpack.c.h.b16 %v1494
        %v1581 = vunpack.c.l.b16 %v1495
        %v1582 = vunpack.c.h.b16 %v1495
        %v1583 = vunpack.c.l.b16 %v1496
        %v1584 = vunpack.c.h.b16 %v1496
        %v1585 = vunpack.c.l.b16 %v1497
        %v1586 = vunpack.c.h.b16 %v1497
        %v1587 = vunpack.c.l.b16 %v1498
        %v1588 = vunpack.c.h.b16 %v1498
        %v1589 = vunpack.c.l.b16 %v1499
        %v1590 = vunpack.c.h.b16 %v1499
        %v1591 = vunpack.c.l.b16 %v1500
        %v1592 = vunpack.c.h.b16 %v1500
        %v1593 = vunpack.c.l.b16 %v1501
        %v1594 = vunpack.c.h.b16 %v1501
        %v1595 = vunpack.c.l.b16 %v1502
        %v1596 = vunpack.c.h.b16 %v1502
        %v1597 = vunpack.c.l.b16 %v1503
        %v1598 = vunpack.c.h.b16 %v1503
        %v1599 = vunpack.c.l.b16 %v1504
        %v1600 = vunpack.c.h.b16 %v1504
        %v1601 = vpack.c.b16 %v1541, %v1537
        %v1602 = vpack.c.b16 %v1542, %v1538
        %v1603 = vpack.c.b16 %v1543, %v1539
        %v1604 = vpack.c.b16 %v1544, %v1540
        %v1605 = vpack.c.b16 %v1549, %v1545
        %v1606 = vpack.c.b16 %v1550, %v1546
        %v1607 = vpack.c.b16 %v1551, %v1547
        %v1608 = vpack.c.b16 %v1552, %v1548
        %v1609 = vpack.c.b16 %v1557, %v1553
        %v1610 = vpack.c.b16 %v1558, %v1554
        %v1611 = vpack.c.b16 %v1559, %v1555
        %v1612 = vpack.c.b16 %v1560, %v1556
        %v1613 = vpack.c.b16 %v1565, %v1561
        %v1614 = vpack.c.b16 %v1566, %v1562
        %v1615 = vpack.c.b16 %v1567, %v1563
        %v1616 = vpack.c.b16 %v1568, %v1564
        %v1617 = vpack.c.b16 %v1573, %v1569
        %v1618 = vpack.c.b16 %v1574, %v1570
        %v1619 = vpack.c.b16 %v1575, %v1571
        %v1620 = vpack.c.b16 %v1576, %v1572
        %v1621 = vpack.c.b16 %v1581, %v1577
        %v1622 = vpack.c.b16 %v1582, %v1578
        %v1623 = vpack.c.b16 %v1583, %v1579
        %v1624 = vpack.c.b16 %v1584, %v1580
        %v1625 = vpack.c.b16 %v1589, %v1585
        %v1626 = vpack.c.b16 %v1590, %v1586
        %v1627 = vpack.c.b16 %v1591, %v1587
        %v1628 = vpack.c.b16 %v1592, %v1588
        %v1629 = vpack.c.b16 %v1597, %v1593
        %v1630 = vpack.c.b16 %v1598, %v1594
        %v1631 = vpack.c.b16 %v1599, %v1595
        %v1632 = vpack.c.b16 %v1600, %v1596
        %1665 = vmatprep.subr.bf16.mxu0 %v1602
        %1666 = vmatpush1.bf16.msra.mxu0 %v1601
        %1667 = vmatprep.subr.bf16.mxu0 %v1606
        %1668 = vmatpush1.bf16.msra.mxu0 %v1605
        %1669 = vmatprep.subr.bf16.mxu0 %v1610
        %1670 = vmatpush1.bf16.msra.mxu0 %v1609
        %1671 = vmatprep.subr.bf16.mxu0 %v1614
        %1672 = vmatpush1.bf16.msra.mxu0 %v1613
        %1673 = vmatprep.subr.bf16.mxu0 %v1618
        %1674 = vmatpush1.bf16.msra.mxu0 %v1617
        %1675 = vmatprep.subr.bf16.mxu0 %v1622
        %1676 = vmatpush1.bf16.msra.mxu0 %v1621
        %1677 = vmatprep.subr.bf16.mxu0 %v1626
        %1678 = vmatpush1.bf16.msra.mxu0 %v1625
        %1679 = vmatprep.subr.bf16.mxu0 %v1630
        %1680 = vmatpush1.bf16.msra.mxu0 %v1629
        %1681 = vmatprep.subr.bf16.mxu0 0
        %1682 = vmatpush1.bf16.msra.mxu0 0
        %1683 = vmatprep.subr.bf16.mxu0 0
        %1684 = vmatpush1.bf16.msra.mxu0 0
        %1685 = vmatprep.subr.bf16.mxu0 0
        %1686 = vmatpush1.bf16.msra.mxu0 0
        %1687 = vmatprep.subr.bf16.mxu0 0
        %1688 = vmatpush1.bf16.msra.mxu0 0
        %1689 = vmatprep.subr.bf16.mxu0 0
        %1690 = vmatpush1.bf16.msra.mxu0 0
        %1691 = vmatprep.subr.bf16.mxu0 0
        %1692 = vmatpush1.bf16.msra.mxu0 0
        %1693 = vmatprep.subr.bf16.mxu0 0
        %1694 = vmatpush1.bf16.msra.mxu0 0
        %1695 = vmatprep.subr.bf16.mxu0 0
        %1696 = vmatpush1.bf16.msra.mxu0 0
        %1697 = vmatprep.mubr.bf16.mxu0 0
        %1698 = vmatmul.mubr.bf16.gmra.mrb[0].mxu0 %v1472
        %v1699 = vpop.f32.mrb[0].mxu0
        %v1700 = vadd.f32 0.0, %v1699
        %v1701 = vpop.f32.mrb[0].mxu0
        %v1702 = vadd.f32 0.0, %v1701
        %v1703 = vpop.f32.mrb[0].mxu0
        %v1704 = vpop.f32.mrb[0].mxu0
        %1705 = vdwg.mxu0
        %1706 = vmatprep.subr.bf16.mxu0 %v1604
        %1707 = vmatpush1.bf16.msra.mxu0 %v1603
        %1708 = vmatprep.subr.bf16.mxu0 %v1608
        %1709 = vmatpush1.bf16.msra.mxu0 %v1607
        %1710 = vmatprep.subr.bf16.mxu0 %v1612
        %1711 = vmatpush1.bf16.msra.mxu0 %v1611
        %1712 = vmatprep.subr.bf16.mxu0 %v1616
        %1713 = vmatpush1.bf16.msra.mxu0 %v1615
        %1714 = vmatprep.subr.bf16.mxu0 %v1620
        %1715 = vmatpush1.bf16.msra.mxu0 %v1619
        %1716 = vmatprep.subr.bf16.mxu0 %v1624
        %1717 = vmatpush1.bf16.msra.mxu0 %v1623
        %1718 = vmatprep.subr.bf16.mxu0 %v1628
        %1719 = vmatpush1.bf16.msra.mxu0 %v1627
        %1720 = vmatprep.subr.bf16.mxu0 %v1632
        %1721 = vmatpush1.bf16.msra.mxu0 %v1631
        %1722 = vmatprep.subr.bf16.mxu0 0
        %1723 = vmatpush1.bf16.msra.mxu0 0
        %1724 = vmatprep.subr.bf16.mxu0 0
        %1725 = vmatpush1.bf16.msra.mxu0 0
        %1726 = vmatprep.subr.bf16.mxu0 0
        %1727 = vmatpush1.bf16.msra.mxu0 0
        %1728 = vmatprep.subr.bf16.mxu0 0
        %1729 = vmatpush1.bf16.msra.mxu0 0
        %1730 = vmatprep.subr.bf16.mxu0 0
        %1731 = vmatpush1.bf16.msra.mxu0 0
        %1732 = vmatprep.subr.bf16.mxu0 0
        %1733 = vmatpush1.bf16.msra.mxu0 0
        %1734 = vmatprep.subr.bf16.mxu0 0
        %1735 = vmatpush1.bf16.msra.mxu0 0
        %1736 = vmatprep.subr.bf16.mxu0 0
        %1737 = vmatpush1.bf16.msra.mxu0 0
        %1738 = vmatprep.mubr.bf16.mxu0 0
        %1739 = vmatmul.mubr.bf16.gmra.mrb[0].mxu0 %v1472
        %v1740 = vpop.f32.mrb[0].mxu0
        %v1741 = vadd.f32 0.0, %v1740
        %v1742 = vpop.f32.mrb[0].mxu0
        %v1743 = vadd.f32 0.0, %v1742
        %v1744 = vpop.f32.mrb[0].mxu0
        %v1745 = vpop.f32.mrb[0].mxu0
        %1746 = vdwg.mxu0
        %v1747 = vmul.f32 %v1700, 0.5
        %v1748 = vmul.f32 %v1702, 0.5
        %v1749 = vmul.f32 %v1700, 0.044715
        %v1750 = vmul.f32 %v1702, 0.044715
        %v1751 = vmul.f32 %v1749, %v1700
        %v1752 = vmul.f32 %v1750, %v1702
        %v1753 = vmul.f32 %v1751, %v1700
        %v1754 = vmul.f32 %v1752, %v1702
        %v1755 = vadd.f32 %v1700, %v1753
        %v1756 = vadd.f32 %v1702, %v1754
        %v1757 = vmul.f32 %v1755, 0.7978846
        %v1758 = vmul.f32 %v1756, 0.7978846
        %v1759 = vtanh.pop %v1757
        %v1760 = vtanh.pop %v1758
        %v1761 = vadd.f32 %v1759, 1.0
        %v1762 = vadd.f32 %v1760, 1.0
        %v1763 = vmul.f32 %v1747, %v1761
        %v1764 = vmul.f32 %v1748, %v1762
        %v1765 = vmul.f32 %v1763, %v1741
        %v1766 = vmul.f32 %v1764, %v1743
        %v1767 = vpack.c.bf16 %v1765, %v1765
        %v1768 = vpack.c.bf16 %v1766, %v1766
        %v1769 = vld [vmem:[%s541] sm:$0xf]
        %v1770 = vld [vmem:[%s541 + $0x4] sm:$0xf]
        %v1771 = vld [vmem:[%s541 + $0x8] sm:$0xf]
        %v1772 = vld [vmem:[%s541 + $0xc] sm:$0xf]
        %v1773 = vld [vmem:[%s541 + $0x10] sm:$0xf]
        %v1774 = vld [vmem:[%s541 + $0x14] sm:$0xf]
        %v1775 = vld [vmem:[%s541 + $0x18] sm:$0xf]
        %v1776 = vld [vmem:[%s541 + $0x1c] sm:$0xf]
        %v1777 = vld [vmem:[%s541 + $0x20] sm:$0xf]
        %v1778 = vld [vmem:[%s541 + $0x24] sm:$0xf]
        %v1779 = vld [vmem:[%s541 + $0x28] sm:$0xf]
        %v1780 = vld [vmem:[%s541 + $0x2c] sm:$0xf]
        %v1781 = vld [vmem:[%s541 + $0x30] sm:$0xf]
        %v1782 = vld [vmem:[%s541 + $0x34] sm:$0xf]
        %v1783 = vld [vmem:[%s541 + $0x38] sm:$0xf]
        %v1784 = vld [vmem:[%s541 + $0x3c] sm:$0xf]
        %v1785 = vld [vmem:[%s541 + $0x40] sm:$0xf]
        %v1786 = vld [vmem:[%s541 + $0x44] sm:$0xf]
        %v1787 = vld [vmem:[%s541 + $0x48] sm:$0xf]
        %v1788 = vld [vmem:[%s541 + $0x4c] sm:$0xf]
        %v1789 = vld [vmem:[%s541 + $0x50] sm:$0xf]
        %v1790 = vld [vmem:[%s541 + $0x54] sm:$0xf]
        %v1791 = vld [vmem:[%s541 + $0x58] sm:$0xf]
        %v1792 = vld [vmem:[%s541 + $0x5c] sm:$0xf]
        %v1793 = vld [vmem:[%s541 + $0x60] sm:$0xf]
        %v1794 = vld [vmem:[%s541 + $0x64] sm:$0xf]
        %v1795 = vld [vmem:[%s541 + $0x68] sm:$0xf]
        %v1796 = vld [vmem:[%s541 + $0x6c] sm:$0xf]
        %v1797 = vld [vmem:[%s541 + $0x70] sm:$0xf]
        %v1798 = vld [vmem:[%s541 + $0x74] sm:$0xf]
        %v1799 = vld [vmem:[%s541 + $0x78] sm:$0xf]
        %v1800 = vld [vmem:[%s541 + $0x7c] sm:$0xf]
        %v1833 = vunpack.c.l.b16 %v1769
        %v1834 = vunpack.c.l.b16 %v1770
        %v1835 = vunpack.c.l.b16 %v1771
        %v1836 = vunpack.c.l.b16 %v1772
        %v1837 = vunpack.c.l.b16 %v1773
        %v1838 = vunpack.c.l.b16 %v1774
        %v1839 = vunpack.c.l.b16 %v1775
        %v1840 = vunpack.c.l.b16 %v1776
        %v1841 = vunpack.c.l.b16 %v1777
        %v1842 = vunpack.c.l.b16 %v1778
        %v1843 = vunpack.c.l.b16 %v1779
        %v1844 = vunpack.c.l.b16 %v1780
        %v1845 = vunpack.c.l.b16 %v1781
        %v1846 = vunpack.c.l.b16 %v1782
        %v1847 = vunpack.c.l.b16 %v1783
        %v1848 = vunpack.c.l.b16 %v1784
        %v1849 = vunpack.c.l.b16 %v1785
        %v1850 = vunpack.c.l.b16 %v1786
        %v1851 = vunpack.c.l.b16 %v1787
        %v1852 = vunpack.c.l.b16 %v1788
        %v1853 = vunpack.c.l.b16 %v1789
        %v1854 = vunpack.c.l.b16 %v1790
        %v1855 = vunpack.c.l.b16 %v1791
        %v1856 = vunpack.c.l.b16 %v1792
        %v1857 = vunpack.c.l.b16 %v1793
        %v1858 = vunpack.c.l.b16 %v1794
        %v1859 = vunpack.c.l.b16 %v1795
        %v1860 = vunpack.c.l.b16 %v1796
        %v1861 = vunpack.c.l.b16 %v1797
        %v1862 = vunpack.c.l.b16 %v1798
        %v1863 = vunpack.c.l.b16 %v1799
        %v1864 = vunpack.c.l.b16 %v1800
        %v1865 = vpack.c.b16 %v1834, %v1833
        %v1866 = vpack.c.b16 %v1836, %v1835
        %v1867 = vpack.c.b16 %v1838, %v1837
        %v1868 = vpack.c.b16 %v1840, %v1839
        %v1869 = vpack.c.b16 %v1842, %v1841
        %v1870 = vpack.c.b16 %v1844, %v1843
        %v1871 = vpack.c.b16 %v1846, %v1845
        %v1872 = vpack.c.b16 %v1848, %v1847
        %v1873 = vpack.c.b16 %v1850, %v1849
        %v1874 = vpack.c.b16 %v1852, %v1851
        %v1875 = vpack.c.b16 %v1854, %v1853
        %v1876 = vpack.c.b16 %v1856, %v1855
        %v1877 = vpack.c.b16 %v1858, %v1857
        %v1878 = vpack.c.b16 %v1860, %v1859
        %v1879 = vpack.c.b16 %v1862, %v1861
        %v1880 = vpack.c.b16 %v1864, %v1863
        %1897 = vmatprep.subr.bf16.mxu0 0
        %1898 = vmatpush1.bf16.msra.mxu0 %v1865
        %1899 = vmatprep.subr.bf16.mxu0 0
        %1900 = vmatpush1.bf16.msra.mxu0 %v1866
        %1901 = vmatprep.subr.bf16.mxu0 0
        %1902 = vmatpush1.bf16.msra.mxu0 %v1867
        %1903 = vmatprep.subr.bf16.mxu0 0
        %1904 = vmatpush1.bf16.msra.mxu0 %v1868
        %1905 = vmatprep.subr.bf16.mxu0 0
        %1906 = vmatpush1.bf16.msra.mxu0 %v1869
        %1907 = vmatprep.subr.bf16.mxu0 0
        %1908 = vmatpush1.bf16.msra.mxu0 %v1870
        %1909 = vmatprep.subr.bf16.mxu0 0
        %1910 = vmatpush1.bf16.msra.mxu0 %v1871
        %1911 = vmatprep.subr.bf16.mxu0 0
        %1912 = vmatpush1.bf16.msra.mxu0 %v1872
        %1913 = vmatprep.subr.bf16.mxu0 0
        %1914 = vmatpush1.bf16.msra.mxu0 %v1873
        %1915 = vmatprep.subr.bf16.mxu0 0
        %1916 = vmatpush1.bf16.msra.mxu0 %v1874
        %1917 = vmatprep.subr.bf16.mxu0 0
        %1918 = vmatpush1.bf16.msra.mxu0 %v1875
        %1919 = vmatprep.subr.bf16.mxu0 0
        %1920 = vmatpush1.bf16.msra.mxu0 %v1876
        %1921 = vmatprep.subr.bf16.mxu0 0
        %1922 = vmatpush1.bf16.msra.mxu0 %v1877
        %1923 = vmatprep.subr.bf16.mxu0 0
        %1924 = vmatpush1.bf16.msra.mxu0 %v1878
        %1925 = vmatprep.subr.bf16.mxu0 0
        %1926 = vmatpush1.bf16.msra.mxu0 %v1879
        %1927 = vmatprep.subr.bf16.mxu0 0
        %1928 = vmatpush1.bf16.msra.mxu0 %v1880
        %1929 = vmatprep.mubr.bf16.mxu0 %v1768
        %1930 = vmatmul.mubr.bf16.gmra.mrb[0].mxu0 %v1767
        %v1931 = vpop.f32.mrb[0].mxu0
        %v1932 = vadd.f32 0.0, %v1931
        %v1933 = vpop.f32.mrb[0].mxu0
        %v1934 = vpop.f32.mrb[0].mxu0
        %v1935 = vpop.f32.mrb[0].mxu0
        %1936 = vdwg.mxu0
        %v1937 = vadd.f32 %v1455, %v1932
        %1938 = vst [vmem:[#allocation2] sm:$0xff] %v1937
        %p1939 = scmp.eq.s32.totalorder %s39, 1
        // Predicated region
        $region93: #{gemma_forward.1} parent=71 // pred_check
          %p1940 = pneg %p1939
        $region94: #{gemma_forward.1} parent=71 // pred_check_branch
          %1942 = sbr.rel (%p1940) target = $region96
        $region95: #{gemma_forward.1} parent=71 // pred_region
          %v1943 = vld [vmem:[%s11] sm:$0x1]
          %v1944 = vmul.f32 %v1937, %v1937
          %1945 = vadd.xlane.f32.xlu0 %v1944
          %v1946 = vpop.xlane.xlu0 %1945
          %v1947 = vmul.f32 %v1946, %v640
          %v1948 = vadd.f32 %v1947, 1e-06
          %v1949 = vrsqrt.pop %v1948
          %v1950 = vmul.f32 %v1937, %v1949
          %v1951 = vadd.f32 %v1943, 1.0
          %v1953 = vlaneseq
          %v1954 = vshrl.u32 %v1953, 7
          %v1955 = vsub.s32 0, %v1954
          %v1956 = vrot.slane %v1951, %v1955
          %v1958 = vmul.f32 %v1950, %v1956
          %v1959 = vpack.c.bf16 %v1958, %v1958
          %v1960 = vld [vmem:[#allocation9] sm:$0xff]
          %v1961 = vld [vmem:[#allocation9 + $0x8] sm:$0xff]
          %v1962 = vld [vmem:[#allocation9 + $0x10] sm:$0xff]
          %v1963 = vld [vmem:[#allocation9 + $0x18] sm:$0xff]
          %v1964 = vld [vmem:[#allocation9 + $0x20] sm:$0xff]
          %v1965 = vld [vmem:[#allocation9 + $0x28] sm:$0xff]
          %v1966 = vld [vmem:[#allocation9 + $0x30] sm:$0xff]
          %v1967 = vld [vmem:[#allocation9 + $0x38] sm:$0xff]
          %v1968 = vld [vmem:[#allocation9 + $0x40] sm:$0xff]
          %v1969 = vld [vmem:[#allocation9 + $0x48] sm:$0xff]
          %v1970 = vld [vmem:[#allocation9 + $0x50] sm:$0xff]
          %v1971 = vld [vmem:[#allocation9 + $0x58] sm:$0xff]
          %v1972 = vld [vmem:[#allocation9 + $0x60] sm:$0xff]
          %v1973 = vld [vmem:[#allocation9 + $0x68] sm:$0xff]
          %v1974 = vld [vmem:[#allocation9 + $0x70] sm:$0xff]
          %v1975 = vld [vmem:[#allocation9 + $0x78] sm:$0xff]
          %v1992 = vunpack.c.l.b16 %v1960
          %v1993 = vunpack.c.h.b16 %v1960
          %v1994 = vunpack.c.l.b16 %v1961
          %v1995 = vunpack.c.h.b16 %v1961
          %v1996 = vunpack.c.l.b16 %v1962
          %v1997 = vunpack.c.h.b16 %v1962
          %v1998 = vunpack.c.l.b16 %v1963
          %v1999 = vunpack.c.h.b16 %v1963
          %v2000 = vunpack.c.l.b16 %v1964
          %v2001 = vunpack.c.h.b16 %v1964
          %v2002 = vunpack.c.l.b16 %v1965
          %v2003 = vunpack.c.h.b16 %v1965
          %v2004 = vunpack.c.l.b16 %v1966
          %v2005 = vunpack.c.h.b16 %v1966
          %v2006 = vunpack.c.l.b16 %v1967
          %v2007 = vunpack.c.h.b16 %v1967
          %v2008 = vunpack.c.l.b16 %v1968
          %v2009 = vunpack.c.h.b16 %v1968
          %v2010 = vunpack.c.l.b16 %v1969
          %v2011 = vunpack.c.h.b16 %v1969
          %v2012 = vunpack.c.l.b16 %v1970
          %v2013 = vunpack.c.h.b16 %v1970
          %v2014 = vunpack.c.l.b16 %v1971
          %v2015 = vunpack.c.h.b16 %v1971
          %v2016 = vunpack.c.l.b16 %v1972
          %v2017 = vunpack.c.h.b16 %v1972
          %v2018 = vunpack.c.l.b16 %v1973
          %v2019 = vunpack.c.h.b16 %v1973
          %v2020 = vunpack.c.l.b16 %v1974
          %v2021 = vunpack.c.h.b16 %v1974
          %v2022 = vunpack.c.l.b16 %v1975
          %v2023 = vunpack.c.h.b16 %v1975
          %v2024 = vpack.c.b16 %v1994, %v1992
          %v2025 = vpack.c.b16 %v1995, %v1993
          %v2026 = vpack.c.b16 %v1998, %v1996
          %v2027 = vpack.c.b16 %v1999, %v1997
          %v2028 = vpack.c.b16 %v2002, %v2000
          %v2029 = vpack.c.b16 %v2003, %v2001
          %v2030 = vpack.c.b16 %v2006, %v2004
          %v2031 = vpack.c.b16 %v2007, %v2005
          %v2032 = vpack.c.b16 %v2010, %v2008
          %v2033 = vpack.c.b16 %v2011, %v2009
          %v2034 = vpack.c.b16 %v2014, %v2012
          %v2035 = vpack.c.b16 %v2015, %v2013
          %v2036 = vpack.c.b16 %v2018, %v2016
          %v2037 = vpack.c.b16 %v2019, %v2017
          %v2038 = vpack.c.b16 %v2022, %v2020
          %v2039 = vpack.c.b16 %v2023, %v2021
          %2056 = vmatprep.subr.bf16.mxu0 %v2025
          %2057 = vmatpush1.bf16.msra.mxu0 %v2024
          %2058 = vmatprep.subr.bf16.mxu0 %v2027
          %2059 = vmatpush1.bf16.msra.mxu0 %v2026
          %2060 = vmatprep.subr.bf16.mxu0 %v2029
          %2061 = vmatpush1.bf16.msra.mxu0 %v2028
          %2062 = vmatprep.subr.bf16.mxu0 %v2031
          %2063 = vmatpush1.bf16.msra.mxu0 %v2030
          %2064 = vmatprep.subr.bf16.mxu0 %v2033
          %2065 = vmatpush1.bf16.msra.mxu0 %v2032
          %2066 = vmatprep.subr.bf16.mxu0 %v2035
          %2067 = vmatpush1.bf16.msra.mxu0 %v2034
          %2068 = vmatprep.subr.bf16.mxu0 %v2037
          %2069 = vmatpush1.bf16.msra.mxu0 %v2036
          %2070 = vmatprep.subr.bf16.mxu0 %v2039
          %2071 = vmatpush1.bf16.msra.mxu0 %v2038
          %2072 = vmatprep.subr.bf16.mxu0 0
          %2073 = vmatpush1.bf16.msra.mxu0 0
          %2074 = vmatprep.subr.bf16.mxu0 0
          %2075 = vmatpush1.bf16.msra.mxu0 0
          %2076 = vmatprep.subr.bf16.mxu0 0
          %2077 = vmatpush1.bf16.msra.mxu0 0
          %2078 = vmatprep.subr.bf16.mxu0 0
          %2079 = vmatpush1.bf16.msra.mxu0 0
          %2080 = vmatprep.subr.bf16.mxu0 0
          %2081 = vmatpush1.bf16.msra.mxu0 0
          %2082 = vmatprep.subr.bf16.mxu0 0
          %2083 = vmatpush1.bf16.msra.mxu0 0
          %2084 = vmatprep.subr.bf16.mxu0 0
          %2085 = vmatpush1.bf16.msra.mxu0 0
          %2086 = vmatprep.subr.bf16.mxu0 0
          %2087 = vmatpush1.bf16.msra.mxu0 0
          %2088 = vmatprep.mubr.bf16.mxu0 0
          %2089 = vmatmul.mubr.bf16.gmra.mrb[0].mxu0 %v1959
          %v2090 = vpop.f32.mrb[0].mxu0
          %v2091 = vadd.f32 0.0, %v2090
          %v2092 = vpop.f32.mrb[0].mxu0
          %v2093 = vadd.f32 0.0, %v2092
          %v2094 = vpop.f32.mrb[0].mxu0
          %v2095 = vpop.f32.mrb[0].mxu0
          %2096 = vdwg.mxu0
          %2097 = vst [vmem:[%s612] sm:$0xff] %v2091
          %2098 = vst [vmem:[%s612 + $0x8] sm:$0xff] %v2093
        $region96: #{gemma_forward.1} parent=71 // pred_fallthru
          _
        %s2099 = sand.u32 %s362, 1
        %s2100 = scalar_lea.sflag [#allocation5], %s2099
        %s2101 = sand.u32 %s362, 1
        %s2102 = smul.addr %s2101, 16
        %s2103 = scalar_lea.vmem [#allocation11], %s2102
        // Predicated region
        $region97: #{gemma_forward.1} parent=71 // pred_check
          %p2104 = pneg %p372
        $region98: #{gemma_forward.1} parent=71 // pred_check_branch
          %2106 = sbr.rel (%p2104) target = $region100
        $region99: #{gemma_forward.1} parent=71 // pred_region
          %s2108 = ssub.s32 256, 256
          %2109 = vsyncadd %s2100, %s2108
          %s2110 = smul.addr %s38, 2
          %s2111 = smul.addr %s2110, 128
          %s2112 = scalar_lea.hbm %s13, %s2111
          %s2114 = sshll.u32 %s2103, 4
          %s2115 = int_to_ptr.vmem [resolvable:$true] %s2114
          %2117 = dma.vmem_to_hbm [thread:$0]  %s2115, 256, %s2112, %s2100
        $region100: #{gemma_forward.1} parent=71 // pred_fallthru
          _
      $region72: #{gemma_forward.1} parent=5 // pred_fallthru
        _
      %p2118 = scmp.le.s32.totalorder 2, %s29
      // Predicated region
      $region101: #{gemma_forward.1} parent=5 // pred_check
        %p2119 = pneg %p2118
      $region102: #{gemma_forward.1} parent=5 // pred_check_branch
        %2121 = sbr.rel (%p2119) target = $region104
      $region103: #{gemma_forward.1} parent=5 // pred_region
        %s2122 = ssub.s32 %s29, 2
        // Predicated region
        $region105: #{gemma_forward.1} parent=103 // pred_check
          %p2123 = pneg %p378
        $region106: #{gemma_forward.1} parent=103 // pred_check_branch
          %2125 = sbr.rel (%p2123) target = $region108
        $region107: #{gemma_forward.1} parent=103 // pred_region
          %s2126 = sand.u32 %s363, 1
          %s2127 = scalar_lea.sflag [#allocation5], %s2126
          %s2128 = sand.u32 %s363, 1
          %s2129 = smul.addr %s2128, 16
          %s2130 = scalar_lea.vmem [#allocation11], %s2129
          %2131 = dma.done %s2127, 256
        $region108: #{gemma_forward.1} parent=103 // pred_fallthru
          _
      $region104: #{gemma_forward.1} parent=5 // pred_fallthru
        _
    $region6: #{gemma_forward.1} parent=1 // loop_footer
      %s33 = sadd.s32 1, %s29
    $region7: #{gemma_forward.1} parent=1 // loop_footer_branch
      %28 = sbr.rel target = $region3
    $region8: #{gemma_forward.1} parent=1 // loop_exit
      _
    %2132 = vsyncpa [#allocation4], 1
    %s2133 = scalar_lea.sflag [#allocation4], 1
    %2134 = vsyncpa %s2133, 1
    %2135 = vsyncpa [#allocation7], 1
    %s2136 = scalar_lea.sflag [#allocation7], 1
    %2137 = vsyncpa %s2136, 1
    %2138 = vsyncpa [#allocation10], 1
    %2139 = vsyncpa [#allocation5], 1
    %s2140 = scalar_lea.sflag [#allocation5], 1
    %2141 = vsyncpa %s2140, 1

</llo_original>
